<compile_context>
chip_gen: v7x
topology: tpu7x:2x2x1
jax: 0.10.0
libtpu: 0.0.40
codegen_flags: <defaults>
</compile_context>

<pallas_src>
import functools

import numpy as np
import jax
import jax.numpy as jnp
from jax import lax
from jax.experimental import pallas as pl
from jax.experimental.pallas import tpu as pltpu


def _round_up(x, m):
    return (x + m - 1) // m * m


# --------------------------------------------------------------------------- #
# Kernel
# --------------------------------------------------------------------------- #
def _cross_conv_kernel(core_ref, top_ref, bot_ref, w1_ref, b1_ref, w2_ref, b2_ref,
                       o_ref, slab_ref, y1_ref, *, K, Wp, W, TH, p, add, approx):
    """One (batch, H-tile) per grid step.

    core_ref : (1, 1, TH*Wp,  C1)  W-padded rows of this tile (rows = H*W flat)
    top_ref  : (1, 1, p*Wp,   C1)  p rows above the tile (zeros at image top)
    bot_ref  : (1, 1, p*Wp,   C1)  p rows below the tile (zeros at image bottom)
    w1_ref   : (K, C1, C_)         cv1 weights, BN scale folded, tap-major
    b1_ref   : (1, C_)             folded-BN bias
    w2_ref   : (K, C_, C2)         cv2 weights, BN scale folded
    b2_ref   : (1, C2)
    o_ref    : (1, TH, W, C2)      final NHWC tile (W already cropped)
    slab_ref : ((TH+2p)*Wp, C1)    VMEM scratch: top | core | bot
    y1_ref   : ((TH+2p)*Wp, C_)    VMEM scratch: cv1 output (halo rows zeroed)
    """
    t = pl.program_id(1)
    rows_x = slab_ref.shape[0]           # (TH + 2p) * Wp
    rows_out = TH * Wp
    hw = p * Wp                          # halo rows (aligned: Wp is 8/16-mult)
    CH = w1_ref.shape[2]
    C2 = w2_ref.shape[2]

    # ---- assemble the H-haloed slab with three aligned stores ----------------
    core = core_ref[0, 0]                               # (rows_out, C1)
    slab_ref[0:hw, :] = top_ref[0, 0]
    slab_ref[hw:hw + rows_out, :] = core
    slab_ref[hw + rows_out:, :] = bot_ref[0, 0]
    slab = slab_ref[...]

    # ---- cv1 : (1,k) conv along W -> K rolled-tap matmuls (MXU, f32 acc) -----
    # rolled[r] = slab[r + dw] for all rows that matter; the K-1 wrapped tail
    # rows only ever feed cropped padding columns.
    acc1 = jnp.dot(slab, w1_ref[0], preferred_element_type=jnp.float32)
    for dw in range(1, K):
        acc1 = acc1 + jnp.dot(pltpu.roll(slab, rows_x - dw, axis=0), w1_ref[dw],
                              preferred_element_type=jnp.float32)
    y1 = acc1 + b1_ref[...]                              # BN scale already in w1
    y1 = y1 * pl.reciprocal(1.0 + jnp.exp(-y1), approx=approx)   # SiLU
    y1_ref[...] = y1.astype(y1_ref.dtype)

    # cv2's H zero-padding: only the first / last H tiles contain out-of-image
    # halo rows, so only they pay for the zero stores.
    @pl.when(t == 0)
    def _():
        y1_ref[0:hw, :] = jnp.zeros((hw, CH), y1_ref.dtype)

    @pl.when(t == pl.num_programs(1) - 1)
    def _():
        y1_ref[hw + rows_out:, :] = jnp.zeros((hw, CH), y1_ref.dtype)

    # ---- cv2 : (k,1) conv along H -> whole-Wp-row shifts (sublane-aligned) ---
    acc2 = jnp.dot(y1_ref[0:rows_out, :], w2_ref[0], preferred_element_type=jnp.float32)
    for dh in range(1, K):
        acc2 = acc2 + jnp.dot(y1_ref[dh * Wp:dh * Wp + rows_out, :], w2_ref[dh],
                              preferred_element_type=jnp.float32)
    y2 = acc2 + b2_ref[...]
    y2 = y2 * pl.reciprocal(1.0 + jnp.exp(-y2), approx=approx)   # SiLU

    if add:
        # residual = core[q + p] (aligned read + XLU roll, no misaligned slice)
        # TODO(synk): on the bf16 path the skip connection is bf16-rounded
        # (input is streamed in compute_dtype); exact f32 skip would need a
        # second f32 input stream.
        y2 = y2 + pltpu.roll(core, rows_out - p, axis=0).astype(jnp.float32)

    # store only the valid W columns, already in NHWC row layout
    o_ref[0] = y2.reshape(TH, Wp, C2)[:, :W, :].astype(o_ref.dtype)


# --------------------------------------------------------------------------- #
# Host-side helpers
# --------------------------------------------------------------------------- #
def _fold_bn(bn, eps=1e-3):
    gamma, beta, mean, var = bn
    scale = (gamma / jnp.sqrt(var + eps)).astype(jnp.float32)
    bias = (beta - mean * scale).astype(jnp.float32)
    return scale, bias


def _vmem_estimate(th, Wp, W, c1, ch, c2, p, k, cbytes, obytes):
    rows_out = th * Wp
    rows_x = (th + 2 * p) * Wp
    return (2 * rows_out * c1 * cbytes              # core input block (double-buffered)
            + 4 * p * Wp * c1 * cbytes              # top/bot halo blocks (double-buffered)
            + rows_x * c1 * cbytes                  # slab scratch
            + rows_x * ch * cbytes                  # y1 scratch
            + rows_x * c1 * cbytes                  # rolled-tap temporary
            + 2 * rows_x * ch * 4                   # acc1 / post-SiLU f32 temporaries
            + 2 * rows_out * c2 * 4                 # acc2 / y2 f32 temporaries
            + 2 * th * W * c2 * obytes              # output block (double-buffered)
            + 2 * k * (c1 * ch + ch * c2) * cbytes  # weights (double-buffered)
            + 4 * (ch + c2) * 4)                    # biases


def _choose_block_h(H, Wp, W, c1, ch, c2, p, k, cbytes, obytes, target_bytes,
                    force_split=False):
    """Largest divisor of H (>= k//2) whose per-step footprint fits the budget."""
    divisors = [d for d in range(1, H + 1) if H % d == 0]
    cand = [d for d in divisors if d >= p] or [H]
    if force_split:                                  # keep both v7x cores busy at batch 1
        split = [d for d in cand if H // d >= 2]
        if split:
            cand = split
    best = cand[0]
    for th in cand:                                  # ascending: keep the largest that fits
        if _vmem_estimate(th, Wp, W, c1, ch, c2, p, k, cbytes, obytes) <= target_bytes:
            best = th
    return best


def _vmem_budget():
    """Generation-aware (v5e/v6e: 128 MiB VMEM, v7x: 64 MiB/TC) tile budget + limit."""
    try:
        cap = getattr(pltpu.get_tpu_info(), "vmem_capacity_bytes", None)
    except Exception:
        cap = None
    if cap is None:
        cap = 64 << 20                               # be conservative if we cannot query
    if cap >= (100 << 20):                           # v5e / v6e
        return 28 << 20, 64 << 20
    return 13 << 20, 36 << 20                        # v7x


# --------------------------------------------------------------------------- #
# Public wrapper
# --------------------------------------------------------------------------- #
def cross_conv_pallas(x_nchw, params, *, k=3, s=1, g=1, shortcut=False,
                      compute_dtype=jnp.bfloat16, block_h=None, out_dtype=None):
    # TODO(synk): stride s>1 and groups g>1 not generalized (module defaults used).
    assert s == 1 and g == 1, "only the default s=1, g=1 path is implemented"
    assert k % 2 == 1, "even k (asymmetric autopad) not supported"
    N, C1, H, W = x_nchw.shape
    w1_t, bn1 = params["w1"], params["bn1"]   # torch layout (c_, c1, 1, k)
    w2_t, bn2 = params["w2"], params["bn2"]   # torch layout (c2, c_, k, 1)
    CH, C2, K = w1_t.shape[0], w2_t.shape[0], k
    p = k // 2
    cdt = jnp.dtype(compute_dtype)
    odt = x_nchw.dtype if out_dtype is None else out_dtype
    align = 16 if cdt.itemsize < 4 else 8          # bf16 packs 2 rows / sublane
    Wp = _round_up(W + 2 * p, align)               # keeps every in-kernel shift aligned

    target_bytes, vmem_limit = _vmem_budget()
    if block_h is None:
        block_h = _choose_block_h(H, Wp, W, C1, CH, C2, p, K,
                                  cdt.itemsize, jnp.dtype(odt).itemsize,
                                  target_bytes, force_split=(N == 1))
    assert H % block_h == 0, "block_h must divide H"
    assert block_h >= p, "block_h must be >= k // 2"
    TH = block_h
    nT = H // TH
    rows_out = TH * Wp
    rows_x = (TH + 2 * p) * Wp
    hw = p * Wp

    # ---- host-side prep: fold BN scale into weights, bias kept separate ------
    sc1, b1 = _fold_bn(bn1)
    sc2, b2 = _fold_bn(bn2)
    # weight layout: torch (co, ci, kh, kw) -> (tap, ci, co), scale on co
    w1 = (jnp.transpose(w1_t[:, :, 0, :], (2, 1, 0)) * sc1[None, None, :]).astype(cdt)
    w2 = (jnp.transpose(w2_t[:, :, :, 0], (2, 1, 0)) * sc2[None, None, :]).astype(cdt)
    b1 = b1.reshape(1, CH)
    b2 = b2.reshape(1, C2)

    # ---- glue: one fused transpose+cast+W-pad; H tiles are a FREE reshape ----
    # The p-row top/bottom halos are tiny side arrays (no full-input duplication).
    x_nhwc = jnp.transpose(x_nchw, (0, 2, 3, 1)).astype(cdt)
    xw = jnp.pad(x_nhwc, ((0, 0), (0, 0), (p, Wp - W - p), (0, 0)))
    core5 = xw.reshape(N, nT, TH, Wp, C1)
    zrow = jnp.zeros((N, 1, p, Wp, C1), cdt)
    if nT > 1:
        top5 = jnp.concatenate([zrow, core5[:, :-1, TH - p:]], axis=1)
        bot5 = jnp.concatenate([core5[:, 1:, :p], zrow], axis=1)
    else:
        top5, bot5 = zrow, zrow
    core = core5.reshape(N, nT, rows_out, C1)
    top = top5.reshape(N, nT, hw, C1)
    bot = bot5.reshape(N, nT, hw, C1)

    add = bool(shortcut) and (C1 == C2)
    approx = cdt != jnp.dtype(jnp.float32)
    kern = functools.partial(_cross_conv_kernel, K=K, Wp=Wp, W=W, TH=TH, p=p,
                             add=add, approx=approx)
    out_nhwc = pl.pallas_call(
        kern,
        out_shape=jax.ShapeDtypeStruct((N, H, W, C2), odt),
        grid_spec=pltpu.PrefetchScalarGridSpec(
            num_scalar_prefetch=0,
            grid=(N, nT),
            in_specs=[
                pl.BlockSpec((1, 1, rows_out, C1), lambda n, t: (n, t, 0, 0)),
                pl.BlockSpec((1, 1, hw, C1), lambda n, t: (n, t, 0, 0)),
                pl.BlockSpec((1, 1, hw, C1), lambda n, t: (n, t, 0, 0)),
                pl.BlockSpec((K, C1, CH), lambda n, t: (0, 0, 0)),
                pl.BlockSpec((1, CH), lambda n, t: (0, 0)),
                pl.BlockSpec((K, CH, C2), lambda n, t: (0, 0, 0)),
                pl.BlockSpec((1, C2), lambda n, t: (0, 0)),
            ],
            out_specs=pl.BlockSpec((1, TH, W, C2), lambda n, t: (n, t, 0, 0)),
            scratch_shapes=[pltpu.VMEM((rows_x, C1), cdt),
                            pltpu.VMEM((rows_x, CH), cdt)]),
        compiler_params=pltpu.CompilerParams(
            dimension_semantics=("parallel", "parallel"),
            vmem_limit_bytes=vmem_limit),
    )(core, top, bot, w1, b1, w2, b2)

    # only the NCHW module-interface transpose remains outside the kernel
    return jnp.transpose(out_nhwc, (0, 3, 1, 2))


# --------------------------------------------------------------------------- #
# Pure-JAX reference and test harness
# --------------------------------------------------------------------------- #
def cross_conv_reference(x_nchw, params, *, k=3, shortcut=False):
    """Pure-JAX reference (lax.conv, f32) for validation."""
    w1_t, bn1 = params["w1"], params["bn1"]
    w2_t, bn2 = params["w2"], params["bn2"]
    sc1, b1 = _fold_bn(bn1)
    sc2, b2 = _fold_bn(bn2)
    pad = k // 2
    x = jnp.transpose(x_nchw, (0, 2, 3, 1)).astype(jnp.float32)
    w1 = jnp.transpose(w1_t, (2, 3, 1, 0)).astype(jnp.float32)   # (1,k,c1,c_)
    y = lax.conv_general_dilated(x, w1, (1, 1), ((0, 0), (pad, pad)),
                                 dimension_numbers=("NHWC", "HWIO", "NHWC"))
    y = y * sc1 + b1
    y = y * jax.nn.sigmoid(y)
    w2 = jnp.transpose(w2_t, (2, 3, 1, 0)).astype(jnp.float32)   # (k,1,c_,c2)
    z = lax.conv_general_dilated(y, w2, (1, 1), ((pad, pad), (0, 0)),
                                 dimension_numbers=("NHWC", "HWIO", "NHWC"))
    z = z * sc2 + b2
    z = z * jax.nn.sigmoid(z)
    z = jnp.transpose(z, (0, 3, 1, 2)).astype(x_nchw.dtype)
    add = shortcut and x_nchw.shape[1] == z.shape[1]
    return x_nchw + z if add else z


def _make_params(key, c1, c_, c2, k):
    ks = jax.random.split(key, 10)
    w1 = 0.1 * jax.random.normal(ks[0], (c_, c1, 1, k), jnp.float32)   # cv1.conv.weight
    w2 = 0.1 * jax.random.normal(ks[1], (c2, c_, k, 1), jnp.float32)   # cv2.conv.weight
    bn1 = (jax.random.uniform(ks[2], (c_,), minval=0.5, maxval=1.5),   # gamma
           0.1 * jax.random.normal(ks[3], (c_,)),                      # beta
           0.1 * jax.random.normal(ks[4], (c_,)),                      # running_mean
           jax.random.uniform(ks[5], (c_,), minval=0.5, maxval=1.5))   # running_var
    bn2 = (jax.random.uniform(ks[6], (c2,), minval=0.5, maxval=1.5),
           0.1 * jax.random.normal(ks[7], (c2,)),
           0.1 * jax.random.normal(ks[8], (c2,)),
           jax.random.uniform(ks[9], (c2,), minval=0.5, maxval=1.5))
    return {"w1": w1, "bn1": bn1, "w2": w2, "bn2": bn2}


if __name__ == "__main__":
    key = jax.random.PRNGKey(0)
    k_x, k_p, k_x2, k_p2 = jax.random.split(key, 4)

    # CrossConv(c1=4, c2=4, k=3, s=1, g=1, e=1.0)
    N, c1, c2, H, W, k, e = 2, 4, 4, 16, 16, 3, 1.0
    c_ = int(c2 * e)
    x = jax.random.normal(k_x, (N, c1, H, W), jnp.float32)
    params = _make_params(k_p, c1, c_, c2, k)

    # Tolerances are set to also cover possible reduced-precision MXU passes;
    # any halo / tiling / indexing bug produces O(0.1+) errors, far above them.
    ref = cross_conv_reference(x, params, k=k, shortcut=False)

    # (1) f32 compute path, two H tiles (exercises halo transfer + edge zeroing)
    out = jax.block_until_ready(cross_conv_pallas(
        x, params, k=k, shortcut=False, compute_dtype=jnp.float32, block_h=8))
    np.testing.assert_allclose(np.asarray(out), np.asarray(ref), rtol=2e-2, atol=2e-2)

    # (2) default bf16 MXU path with the fused residual (auto tile -> single tile)
    ref_s = cross_conv_reference(x, params, k=k, shortcut=True)
    out_s = jax.block_until_ready(cross_conv_pallas(x, params, k=k, shortcut=True))
    np.testing.assert_allclose(np.asarray(out_s), np.asarray(ref_s), rtol=3e-2, atol=3e-2)

    # (3) f32 compute path with the fused residual, auto tile size
    out_s32 = jax.block_until_ready(cross_conv_pallas(
        x, params, k=k, shortcut=True, compute_dtype=jnp.float32))
    np.testing.assert_allclose(np.asarray(out_s32), np.asarray(ref_s), rtol=2e-2, atol=2e-2)

    # (4) asymmetric channels, W not a multiple of 8, batch 1, three H tiles, bf16
    c1b, c2b, Hb, Wb = 4, 8, 12, 12
    c_b = int(c2b * 1.0)
    xb = jax.random.normal(k_x2, (1, c1b, Hb, Wb), jnp.float32)
    params_b = _make_params(k_p2, c1b, c_b, c2b, k)
    ref_b = cross_conv_reference(xb, params_b, k=k, shortcut=False)
    out_b = jax.block_until_ready(cross_conv_pallas(
        xb, params_b, k=k, shortcut=False, block_h=4))
    np.testing.assert_allclose(np.asarray(out_b), np.asarray(ref_b), rtol=3e-2, atol=3e-2)

    print("KERNEL_OK")
</pallas_src>

<mosaic_0001>
module attributes {stable_mosaic.version = 11 : i64} {
  func.func @_cross_conv_kernel(%arg0: i32, %arg1: i32, %arg2: memref<1x1x192x4xf32, #tpu.memory_space<vmem>>, %arg3: memref<1x1x24x4xf32, #tpu.memory_space<vmem>>, %arg4: memref<1x1x24x4xf32, #tpu.memory_space<vmem>>, %arg5: memref<3x4x4xf32, #tpu.memory_space<vmem>>, %arg6: memref<1x4xf32, #tpu.memory_space<vmem>>, %arg7: memref<3x4x4xf32, #tpu.memory_space<vmem>>, %arg8: memref<1x4xf32, #tpu.memory_space<vmem>>, %arg9: memref<1x8x16x4xf32, #tpu.memory_space<vmem>>, %arg10: memref<240x4xf32, #tpu.memory_space<vmem>>, %arg11: memref<240x4xf32, #tpu.memory_space<vmem>>) attributes {dimension_semantics = [#tpu.dimension_semantics<parallel>, #tpu.dimension_semantics<parallel>], iteration_bounds = array<i64: 2, 2>, scalar_prefetch = 0 : i64, scratch_operands = 2 : i64, tpu.core_type = #tpu.core_type<tc>, window_params = [{transform_indices = @transform_0, window_bounds = array<i64: 1, 1, 192, 4>}, {transform_indices = @transform_1, window_bounds = array<i64: 1, 1, 24, 4>}, {transform_indices = @transform_2, window_bounds = array<i64: 1, 1, 24, 4>}, {pipeline_mode = #tpu.pipeline_mode<synchronous>, transform_indices = @transform_3, window_bounds = array<i64: 3, 4, 4>}, {pipeline_mode = #tpu.pipeline_mode<synchronous>, transform_indices = @transform_4, window_bounds = array<i64: 1, 4>}, {pipeline_mode = #tpu.pipeline_mode<synchronous>, transform_indices = @transform_5, window_bounds = array<i64: 3, 4, 4>}, {pipeline_mode = #tpu.pipeline_mode<synchronous>, transform_indices = @transform_6, window_bounds = array<i64: 1, 4>}, {transform_indices = @transform_7, window_bounds = array<i64: 1, 8, 16, 4>}]} {
    %c0 = arith.constant 0 : index
    %c0_0 = arith.constant 0 : index
    %c0_1 = arith.constant 0 : index
    %c0_2 = arith.constant 0 : index
    %0 = vector.load %arg2[%c0, %c0_0, %c0_1, %c0_2] : memref<1x1x192x4xf32, #tpu.memory_space<vmem>>, vector<1x1x192x4xf32>
    %1 = vector.shape_cast %0 : vector<1x1x192x4xf32> to vector<192x4xf32>
    %c0_3 = arith.constant 0 : index
    %c0_4 = arith.constant 0 : index
    %c0_5 = arith.constant 0 : index
    %c0_6 = arith.constant 0 : index
    %2 = vector.load %arg3[%c0_3, %c0_4, %c0_5, %c0_6] : memref<1x1x24x4xf32, #tpu.memory_space<vmem>>, vector<1x1x24x4xf32>
    %3 = vector.shape_cast %2 : vector<1x1x24x4xf32> to vector<24x4xf32>
    %c0_7 = arith.constant 0 : index
    %c0_8 = arith.constant 0 : index
    %4 = vector.load %arg10[%c0_7, %c0_8] : memref<240x4xf32, #tpu.memory_space<vmem>>, vector<24x4xf32>
    tpu.vector_store %arg10[%c0_7, %c0_8], %3 {strides = array<i32>} : memref<240x4xf32, #tpu.memory_space<vmem>>, vector<24x4xf32>,
    %c24 = arith.constant 24 : index
    %c0_9 = arith.constant 0 : index
    %5 = vector.load %arg10[%c24, %c0_9] : memref<240x4xf32, #tpu.memory_space<vmem>>, vector<192x4xf32>
    tpu.vector_store %arg10[%c24, %c0_9], %1 {strides = array<i32>} : memref<240x4xf32, #tpu.memory_space<vmem>>, vector<192x4xf32>,
    %c0_10 = arith.constant 0 : index
    %c0_11 = arith.constant 0 : index
    %c0_12 = arith.constant 0 : index
    %c0_13 = arith.constant 0 : index
    %6 = vector.load %arg4[%c0_10, %c0_11, %c0_12, %c0_13] : memref<1x1x24x4xf32, #tpu.memory_space<vmem>>, vector<1x1x24x4xf32>
    %7 = vector.shape_cast %6 : vector<1x1x24x4xf32> to vector<24x4xf32>
    %c216 = arith.constant 216 : index
    %c0_14 = arith.constant 0 : index
    %8 = vector.load %arg10[%c216, %c0_14] : memref<240x4xf32, #tpu.memory_space<vmem>>, vector<24x4xf32>
    tpu.vector_store %arg10[%c216, %c0_14], %7 {strides = array<i32>} : memref<240x4xf32, #tpu.memory_space<vmem>>, vector<24x4xf32>,
    %c0_15 = arith.constant 0 : index
    %c0_16 = arith.constant 0 : index
    %9 = vector.load %arg10[%c0_15, %c0_16] : memref<240x4xf32, #tpu.memory_space<vmem>>, vector<240x4xf32>
    %c0_17 = arith.constant 0 : index
    %c0_18 = arith.constant 0 : index
    %c0_19 = arith.constant 0 : index
    %10 = vector.load %arg5[%c0_17, %c0_18, %c0_19] : memref<3x4x4xf32, #tpu.memory_space<vmem>>, vector<1x4x4xf32>
    %11 = vector.shape_cast %10 : vector<1x4x4xf32> to vector<4x4xf32>
    %cst = arith.constant dense<0.000000e+00> : vector<240x4xf32>
    %12 = tpu.matmul %9, %11, %cst {dimension_numbers = #tpu.dot_dimension_numbers<[1], [0], [0], [1], [0, 0, 1, 1], [], []>} : vector<240x4xf32>, vector<4x4xf32>, vector<240x4xf32> -> vector<240x4xf32>
    %c239_i32 = arith.constant 239 : i32
    %13 = tpu.dynamic_rotate %9 by %c239_i32 dim 0 : vector<240x4xf32>, i32 -> vector<240x4xf32>
    %c1 = arith.constant 1 : index
    %c0_20 = arith.constant 0 : index
    %c0_21 = arith.constant 0 : index
    %14 = vector.load %arg5[%c1, %c0_20, %c0_21] : memref<3x4x4xf32, #tpu.memory_space<vmem>>, vector<1x4x4xf32>
    %15 = vector.shape_cast %14 : vector<1x4x4xf32> to vector<4x4xf32>
    %cst_22 = arith.constant dense<0.000000e+00> : vector<240x4xf32>
    %16 = tpu.matmul %13, %15, %cst_22 {dimension_numbers = #tpu.dot_dimension_numbers<[1], [0], [0], [1], [0, 0, 1, 1], [], []>} : vector<240x4xf32>, vector<4x4xf32>, vector<240x4xf32> -> vector<240x4xf32>
    %17 = arith.addf %12, %16 : vector<240x4xf32>
    %c238_i32 = arith.constant 238 : i32
    %18 = tpu.dynamic_rotate %9 by %c238_i32 dim 0 : vector<240x4xf32>, i32 -> vector<240x4xf32>
    %c2 = arith.constant 2 : index
    %c0_23 = arith.constant 0 : index
    %c0_24 = arith.constant 0 : index
    %19 = vector.load %arg5[%c2, %c0_23, %c0_24] : memref<3x4x4xf32, #tpu.memory_space<vmem>>, vector<1x4x4xf32>
    %20 = vector.shape_cast %19 : vector<1x4x4xf32> to vector<4x4xf32>
    %cst_25 = arith.constant dense<0.000000e+00> : vector<240x4xf32>
    %21 = tpu.matmul %18, %20, %cst_25 {dimension_numbers = #tpu.dot_dimension_numbers<[1], [0], [0], [1], [0, 0, 1, 1], [], []>} : vector<240x4xf32>, vector<4x4xf32>, vector<240x4xf32> -> vector<240x4xf32>
    %22 = arith.addf %17, %21 : vector<240x4xf32>
    %c0_26 = arith.constant 0 : index
    %c0_27 = arith.constant 0 : index
    %23 = vector.load %arg6[%c0_26, %c0_27] : memref<1x4xf32, #tpu.memory_space<vmem>>, vector<1x4xf32>
    %24 = vector.broadcast %23 : vector<1x4xf32> to vector<240x4xf32>
    %25 = arith.addf %22, %24 : vector<240x4xf32>
    %cst_28 = arith.constant 0.000000e+00 : f32
    %26 = vector.broadcast %cst_28 : f32 to vector<240x4xf32>
    %27 = arith.subf %26, %25 : vector<240x4xf32>
    %28 = math.exp %27 : vector<240x4xf32>
    %cst_29 = arith.constant 1.000000e+00 : f32
    %29 = vector.broadcast %cst_29 : f32 to vector<240x4xf32>
    %30 = arith.addf %29, %28 : vector<240x4xf32>
    %31 = tpu.reciprocal %30 : vector<240x4xf32> -> vector<240x4xf32>
    %32 = arith.mulf %25, %31 : vector<240x4xf32>
    %c0_30 = arith.constant 0 : index
    %c0_31 = arith.constant 0 : index
    %33 = vector.load %arg11[%c0_30, %c0_31] : memref<240x4xf32, #tpu.memory_space<vmem>>, vector<240x4xf32>
    tpu.vector_store %arg11[%c0_30, %c0_31], %32 {strides = array<i32>} : memref<240x4xf32, #tpu.memory_space<vmem>>, vector<240x4xf32>,
    %c0_i32 = arith.constant 0 : i32
    %34 = arith.cmpi eq, %arg1, %c0_i32 : i32
    %35 = arith.extui %34 : i1 to i32
    %c0_i32_32 = arith.constant 0 : i32
    %36 = arith.cmpi ne, %35, %c0_i32_32 : i32
    scf.if %36 {
      %cst_59 = arith.constant 0.000000e+00 : f32
      %69 = vector.broadcast %cst_59 : f32 to vector<24x4xf32>
      %c0_60 = arith.constant 0 : index
      %c0_61 = arith.constant 0 : index
      %70 = vector.load %arg11[%c0_60, %c0_61] : memref<240x4xf32, #tpu.memory_space<vmem>>, vector<24x4xf32>
      tpu.vector_store %arg11[%c0_60, %c0_61], %69 {strides = array<i32>} : memref<240x4xf32, #tpu.memory_space<vmem>>, vector<24x4xf32>,
    } else {
    }
    %c1_i32 = arith.constant 1 : i32
    %37 = arith.cmpi eq, %arg1, %c1_i32 : i32
    %38 = arith.extui %37 : i1 to i32
    %c0_i32_33 = arith.constant 0 : i32
    %39 = arith.cmpi ne, %38, %c0_i32_33 : i32
    scf.if %39 {
      %cst_59 = arith.constant 0.000000e+00 : f32
      %69 = vector.broadcast %cst_59 : f32 to vector<24x4xf32>
      %c216_60 = arith.constant 216 : index
      %c0_61 = arith.constant 0 : index
      %70 = vector.load %arg11[%c216_60, %c0_61] : memref<240x4xf32, #tpu.memory_space<vmem>>, vector<24x4xf32>
      tpu.vector_store %arg11[%c216_60, %c0_61], %69 {strides = array<i32>} : memref<240x4xf32, #tpu.memory_space<vmem>>, vector<24x4xf32>,
    } else {
    }
    %c0_34 = arith.constant 0 : index
    %c0_35 = arith.constant 0 : index
    %40 = vector.load %arg11[%c0_34, %c0_35] : memref<240x4xf32, #tpu.memory_space<vmem>>, vector<192x4xf32>
    %c0_36 = arith.constant 0 : index
    %c0_37 = arith.constant 0 : index
    %c0_38 = arith.constant 0 : index
    %41 = vector.load %arg7[%c0_36, %c0_37, %c0_38] : memref<3x4x4xf32, #tpu.memory_space<vmem>>, vector<1x4x4xf32>
    %42 = vector.shape_cast %41 : vector<1x4x4xf32> to vector<4x4xf32>
    %cst_39 = arith.constant dense<0.000000e+00> : vector<192x4xf32>
    %43 = tpu.matmul %40, %42, %cst_39 {dimension_numbers = #tpu.dot_dimension_numbers<[1], [0], [0], [1], [0, 0, 1, 1], [], []>} : vector<192x4xf32>, vector<4x4xf32>, vector<192x4xf32> -> vector<192x4xf32>
    %c24_40 = arith.constant 24 : index
    %c0_41 = arith.constant 0 : index
    %44 = vector.load %arg11[%c24_40, %c0_41] : memref<240x4xf32, #tpu.memory_space<vmem>>, vector<192x4xf32>
    %c1_42 = arith.constant 1 : index
    %c0_43 = arith.constant 0 : index
    %c0_44 = arith.constant 0 : index
    %45 = vector.load %arg7[%c1_42, %c0_43, %c0_44] : memref<3x4x4xf32, #tpu.memory_space<vmem>>, vector<1x4x4xf32>
    %46 = vector.shape_cast %45 : vector<1x4x4xf32> to vector<4x4xf32>
    %cst_45 = arith.constant dense<0.000000e+00> : vector<192x4xf32>
    %47 = tpu.matmul %44, %46, %cst_45 {dimension_numbers = #tpu.dot_dimension_numbers<[1], [0], [0], [1], [0, 0, 1, 1], [], []>} : vector<192x4xf32>, vector<4x4xf32>, vector<192x4xf32> -> vector<192x4xf32>
    %48 = arith.addf %43, %47 : vector<192x4xf32>
    %c48 = arith.constant 48 : index
    %c0_46 = arith.constant 0 : index
    %49 = vector.load %arg11[%c48, %c0_46] : memref<240x4xf32, #tpu.memory_space<vmem>>, vector<192x4xf32>
    %c2_47 = arith.constant 2 : index
    %c0_48 = arith.constant 0 : index
    %c0_49 = arith.constant 0 : index
    %50 = vector.load %arg7[%c2_47, %c0_48, %c0_49] : memref<3x4x4xf32, #tpu.memory_space<vmem>>, vector<1x4x4xf32>
    %51 = vector.shape_cast %50 : vector<1x4x4xf32> to vector<4x4xf32>
    %cst_50 = arith.constant dense<0.000000e+00> : vector<192x4xf32>
    %52 = tpu.matmul %49, %51, %cst_50 {dimension_numbers = #tpu.dot_dimension_numbers<[1], [0], [0], [1], [0, 0, 1, 1], [], []>} : vector<192x4xf32>, vector<4x4xf32>, vector<192x4xf32> -> vector<192x4xf32>
    %53 = arith.addf %48, %52 : vector<192x4xf32>
    %c0_51 = arith.constant 0 : index
    %c0_52 = arith.constant 0 : index
    %54 = vector.load %arg8[%c0_51, %c0_52] : memref<1x4xf32, #tpu.memory_space<vmem>>, vector<1x4xf32>
    %55 = vector.broadcast %54 : vector<1x4xf32> to vector<192x4xf32>
    %56 = arith.addf %53, %55 : vector<192x4xf32>
    %cst_53 = arith.constant 0.000000e+00 : f32
    %57 = vector.broadcast %cst_53 : f32 to vector<192x4xf32>
    %58 = arith.subf %57, %56 : vector<192x4xf32>
    %59 = math.exp %58 : vector<192x4xf32>
    %cst_54 = arith.constant 1.000000e+00 : f32
    %60 = vector.broadcast %cst_54 : f32 to vector<192x4xf32>
    %61 = arith.addf %60, %59 : vector<192x4xf32>
    %62 = tpu.reciprocal %61 : vector<192x4xf32> -> vector<192x4xf32>
    %63 = arith.mulf %56, %62 : vector<192x4xf32>
    %64 = vector.shape_cast %63 : vector<192x4xf32> to vector<8x24x4xf32>
    %65 = vector.extract_strided_slice %64 {offsets = [0, 0, 0], sizes = [8, 16, 4], strides = [1, 1, 1]} : vector<8x24x4xf32> to vector<8x16x4xf32>
    %c0_55 = arith.constant 0 : index
    %c0_56 = arith.constant 0 : index
    %c0_57 = arith.constant 0 : index
    %c0_58 = arith.constant 0 : index
    %66 = vector.load %arg9[%c0_55, %c0_56, %c0_57, %c0_58] : memref<1x8x16x4xf32, #tpu.memory_space<vmem>>, vector<1x8x16x4xf32>
    %67 = vector.shape_cast %66 : vector<1x8x16x4xf32> to vector<8x16x4xf32>
    %68 = vector.shape_cast %65 : vector<8x16x4xf32> to vector<1x8x16x4xf32>
    tpu.vector_store %arg9[%c0_55, %c0_56, %c0_57, %c0_58], %68 {strides = array<i32>} : memref<1x8x16x4xf32, #tpu.memory_space<vmem>>, vector<1x8x16x4xf32>,
    return
  }
  func.func @transform_0(%arg0: i32, %arg1: i32) -> (i32, i32, i32, i32) {
    %c0_i32 = arith.constant 0 : i32
    %c0_i32_0 = arith.constant 0 : i32
    %c0_i32_1 = arith.constant 0 : i32
    return %arg0, %arg1, %c0_i32, %c0_i32_0 : i32, i32, i32, i32
  }
  func.func @transform_1(%arg0: i32, %arg1: i32) -> (i32, i32, i32, i32) {
    %c0_i32 = arith.constant 0 : i32
    %c0_i32_0 = arith.constant 0 : i32
    %c0_i32_1 = arith.constant 0 : i32
    return %arg0, %arg1, %c0_i32, %c0_i32_0 : i32, i32, i32, i32
  }
  func.func @transform_2(%arg0: i32, %arg1: i32) -> (i32, i32, i32, i32) {
    %c0_i32 = arith.constant 0 : i32
    %c0_i32_0 = arith.constant 0 : i32
    %c0_i32_1 = arith.constant 0 : i32
    return %arg0, %arg1, %c0_i32, %c0_i32_0 : i32, i32, i32, i32
  }
  func.func @transform_3(%arg0: i32, %arg1: i32) -> (i32, i32, i32) {
    %c0_i32 = arith.constant 0 : i32
    %c0_i32_0 = arith.constant 0 : i32
    %c0_i32_1 = arith.constant 0 : i32
    %c0_i32_2 = arith.constant 0 : i32
    return %c0_i32, %c0_i32_0, %c0_i32_1 : i32, i32, i32
  }
  func.func @transform_4(%arg0: i32, %arg1: i32) -> (i32, i32) {
    %c0_i32 = arith.constant 0 : i32
    %c0_i32_0 = arith.constant 0 : i32
    %c0_i32_1 = arith.constant 0 : i32
    return %c0_i32, %c0_i32_0 : i32, i32
  }
  func.func @transform_5(%arg0: i32, %arg1: i32) -> (i32, i32, i32) {
    %c0_i32 = arith.constant 0 : i32
    %c0_i32_0 = arith.constant 0 : i32
    %c0_i32_1 = arith.constant 0 : i32
    %c0_i32_2 = arith.constant 0 : i32
    return %c0_i32, %c0_i32_0, %c0_i32_1 : i32, i32, i32
  }
  func.func @transform_6(%arg0: i32, %arg1: i32) -> (i32, i32) {
    %c0_i32 = arith.constant 0 : i32
    %c0_i32_0 = arith.constant 0 : i32
    %c0_i32_1 = arith.constant 0 : i32
    return %c0_i32, %c0_i32_0 : i32, i32
  }
  func.func @transform_7(%arg0: i32, %arg1: i32) -> (i32, i32, i32, i32) {
    %c0_i32 = arith.constant 0 : i32
    %c0_i32_0 = arith.constant 0 : i32
    %c0_i32_1 = arith.constant 0 : i32
    return %arg0, %arg1, %c0_i32, %c0_i32_0 : i32, i32, i32, i32
  }
}

</mosaic_0001>

<llo_original>
// kernel: tpu_custom_call.1
$region0: #{tpu_custom_call.1}
  #allocation0 [shape = 'u32[]', space=smem, size = 0x4, offset = 0x4, fixed_abs, tag = 'smem constant byte address 0x4 - core index']
  #allocation1 [shape = 'u32[144,128]{1,0:T(1,128)}', space=vmem, size = 0x12000, scoped, tag = 'internal scratch']
  #allocation2 [shape = 'f32[240,4]{1,0:T(8,128)}', space=vmem, size = 0x1e000, scoped, tag = 'scratch operand']
  #allocation3 [shape = 'f32[240,4]{1,0:T(8,128)}', space=vmem, size = 0x1e000, scoped, tag = 'scratch operand']
  %s0 = inlined_call_operand.vmem [shape: f32[2,2,192,4], index: 0, kind: input, shape index: {}]
  %s1 = inlined_call_operand.vmem [shape: f32[2,2,24,4], index: 1, kind: input, shape index: {}]
  %s2 = inlined_call_operand.vmem [shape: f32[2,2,24,4], index: 2, kind: input, shape index: {}]
  %s3 = inlined_call_operand.vmem [shape: f32[3,4,4], index: 3, kind: input, shape index: {}]
  %s4 = inlined_call_operand.vmem [shape: f32[1,4], index: 4, kind: input, shape index: {}]
  %s5 = inlined_call_operand.vmem [shape: f32[3,4,4], index: 5, kind: input, shape index: {}]
  %s6 = inlined_call_operand.vmem [shape: f32[1,4], index: 6, kind: input, shape index: {}]
  %s7 = inlined_call_operand.vmem [shape: f32[2,16,16,4], index: 7, kind: output, shape index: {}]
  %s8 = sld [smem:[#allocation0]]
  $region69: #{tpu_custom_call.1} parent=0
    _
  %s10 = ssub.s32 1, %s8
  %s11 = scalar_select 0, %s10, %s8
  loop: start=0, step=1, limit=6
  $region2: #{tpu_custom_call.1} parent=0 // loop_pre_header
    _
  $region3: #{tpu_custom_call.1} parent=0 // loop_header
    %s13 = sphi 0, %s17
    %p14 = scmp.ge.s32.totalorder %s13, 6
    %s20 = sphi 0, %s32
    %s21 = sphi 0, %s28
    %s22 = sphi 0, %s20
    %s23 = sphi 0, %s21
    %s24 = sphi 0, %s22
    %s25 = sphi 0, %s23
    %s37 = sphi 0, %s39
    %s40 = sphi 0, %s37
    %s41 = sphi 0, %s40
    %s57 = sphi 0, %s41
    %s65 = sphi 0, %s67
    %s68 = sphi 0, %s65
    %s69 = sphi 0, %s68
    %s85 = sphi 0, %s69
    %s93 = sphi 0, %s95
    %s96 = sphi 0, %s93
    %s97 = sphi 0, %s96
    %s113 = sphi 0, %s97
    %s117 = sphi 0, %s117
    %s119 = sphi 0, %s117
    %s120 = sphi 0, %s119
    %s134 = sphi 0, %s120
    %s138 = sphi 0, %s138
    %s140 = sphi 0, %s138
    %s141 = sphi 0, %s140
    %s155 = sphi 0, %s141
    %s159 = sphi 0, %s159
    %s161 = sphi 0, %s159
    %s162 = sphi 0, %s161
    %s176 = sphi 0, %s162
    %s180 = sphi 0, %s180
    %s182 = sphi 0, %s180
    %s183 = sphi 0, %s182
    %s197 = sphi 0, %s183
    %s205 = sphi 0, %s207
    %s208 = sphi 0, %s205
    %s209 = sphi 0, %s208
    %s225 = sphi 0, %s209
  $region4: #{tpu_custom_call.1} parent=0 // loop_header_branch
    %16 = sbr.rel (%p14) target = $region8
  $region5: #{tpu_custom_call.1} parent=0 // loop_body
    %s18 = ssub.s32 %s13, 1
    %s19 = ssub.s32 %s13, 2
    %s26 = sadd.s32 1, %s21
    %p27 = scmp.ge.s32.totalorder %s26, 2
    %s28 = scalar_select %p27, 0, %s26
    %s29 = sadd.s32 1, %s20
    %s30 = scalar_select %p27, %s29, %s20
    %p31 = scmp.ge.s32.totalorder %s30, 2
    %s32 = scalar_select %p31, 0, %s30
    %s33 = ssub.s32 %s20, %s32
    %s34 = ssub.s32 %s21, %s28
    %s35 = sor.u32 %s33, %s34
    %p36 = scmp.eq.s32.totalorder %s35, 0
    %s38 = sadd.s32 %s37, 1
    %s39 = scalar_select %p36, %s37, %s38
    %p42 = pneg %p36
    %p43 = scmp.eq.s32.totalorder %s13, 3
    %p44 = por %p42, %p43
    %p45 = scmp.ne.s32.totalorder %s37, %s40
    %p46 = scmp.eq.s32.totalorder %s13, 0
    %p47 = por %p45, %p46
    %p48 = scmp.ne.s32.totalorder %s37, %s40
    %p49 = scmp.eq.s32.totalorder %s18, 3
    %p50 = por %p48, %p49
    %p51 = scmp.ne.s32.totalorder %s40, %s41
    %p52 = scmp.eq.s32.totalorder %s18, 0
    %p53 = por %p51, %p52
    %p54 = scmp.ne.s32.totalorder %s40, %s41
    %p55 = scmp.eq.s32.totalorder %s19, 3
    %p56 = por %p54, %p55
    %p58 = scmp.ne.s32.totalorder %s41, %s57
    %p59 = scmp.eq.s32.totalorder %s19, 0
    %p60 = por %p58, %p59
    %s61 = ssub.s32 %s20, %s32
    %s62 = ssub.s32 %s21, %s28
    %s63 = sor.u32 %s61, %s62
    %p64 = scmp.eq.s32.totalorder %s63, 0
    %s66 = sadd.s32 %s65, 1
    %s67 = scalar_select %p64, %s65, %s66
    %p70 = pneg %p64
    %p71 = scmp.eq.s32.totalorder %s13, 3
    %p72 = por %p70, %p71
    %p73 = scmp.ne.s32.totalorder %s65, %s68
    %p74 = scmp.eq.s32.totalorder %s13, 0
    %p75 = por %p73, %p74
    %p76 = scmp.ne.s32.totalorder %s65, %s68
    %p77 = scmp.eq.s32.totalorder %s18, 3
    %p78 = por %p76, %p77
    %p79 = scmp.ne.s32.totalorder %s68, %s69
    %p80 = scmp.eq.s32.totalorder %s18, 0
    %p81 = por %p79, %p80
    %p82 = scmp.ne.s32.totalorder %s68, %s69
    %p83 = scmp.eq.s32.totalorder %s19, 3
    %p84 = por %p82, %p83
    %p86 = scmp.ne.s32.totalorder %s69, %s85
    %p87 = scmp.eq.s32.totalorder %s19, 0
    %p88 = por %p86, %p87
    %s89 = ssub.s32 %s20, %s32
    %s90 = ssub.s32 %s21, %s28
    %s91 = sor.u32 %s89, %s90
    %p92 = scmp.eq.s32.totalorder %s91, 0
    %s94 = sadd.s32 %s93, 1
    %s95 = scalar_select %p92, %s93, %s94
    %p98 = pneg %p92
    %p99 = scmp.eq.s32.totalorder %s13, 3
    %p100 = por %p98, %p99
    %p101 = scmp.ne.s32.totalorder %s93, %s96
    %p102 = scmp.eq.s32.totalorder %s13, 0
    %p103 = por %p101, %p102
    %p104 = scmp.ne.s32.totalorder %s93, %s96
    %p105 = scmp.eq.s32.totalorder %s18, 3
    %p106 = por %p104, %p105
    %p107 = scmp.ne.s32.totalorder %s96, %s97
    %p108 = scmp.eq.s32.totalorder %s18, 0
    %p109 = por %p107, %p108
    %p110 = scmp.ne.s32.totalorder %s96, %s97
    %p111 = scmp.eq.s32.totalorder %s19, 3
    %p112 = por %p110, %p111
    %p114 = scmp.ne.s32.totalorder %s97, %s113
    %p115 = scmp.eq.s32.totalorder %s19, 0
    %p116 = por %p114, %p115
    %s118 = sadd.s32 %s117, 1
    %p121 = scmp.eq.s32.totalorder %s13, 3
    %p122 = scmp.ne.s32.totalorder %s117, %s119
    %p123 = scmp.eq.s32.totalorder %s13, 0
    %p124 = por %p122, %p123
    %p125 = scmp.ne.s32.totalorder %s117, %s119
    %p126 = scmp.eq.s32.totalorder %s18, 3
    %p127 = por %p125, %p126
    %p128 = scmp.ne.s32.totalorder %s119, %s120
    %p129 = scmp.eq.s32.totalorder %s18, 0
    %p130 = por %p128, %p129
    %p131 = scmp.ne.s32.totalorder %s119, %s120
    %p132 = scmp.eq.s32.totalorder %s19, 3
    %p133 = por %p131, %p132
    %p135 = scmp.ne.s32.totalorder %s120, %s134
    %p136 = scmp.eq.s32.totalorder %s19, 0
    %p137 = por %p135, %p136
    %s139 = sadd.s32 %s138, 1
    %p142 = scmp.eq.s32.totalorder %s13, 3
    %p143 = scmp.ne.s32.totalorder %s138, %s140
    %p144 = scmp.eq.s32.totalorder %s13, 0
    %p145 = por %p143, %p144
    %p146 = scmp.ne.s32.totalorder %s138, %s140
    %p147 = scmp.eq.s32.totalorder %s18, 3
    %p148 = por %p146, %p147
    %p149 = scmp.ne.s32.totalorder %s140, %s141
    %p150 = scmp.eq.s32.totalorder %s18, 0
    %p151 = por %p149, %p150
    %p152 = scmp.ne.s32.totalorder %s140, %s141
    %p153 = scmp.eq.s32.totalorder %s19, 3
    %p154 = por %p152, %p153
    %p156 = scmp.ne.s32.totalorder %s141, %s155
    %p157 = scmp.eq.s32.totalorder %s19, 0
    %p158 = por %p156, %p157
    %s160 = sadd.s32 %s159, 1
    %p163 = scmp.eq.s32.totalorder %s13, 3
    %p164 = scmp.ne.s32.totalorder %s159, %s161
    %p165 = scmp.eq.s32.totalorder %s13, 0
    %p166 = por %p164, %p165
    %p167 = scmp.ne.s32.totalorder %s159, %s161
    %p168 = scmp.eq.s32.totalorder %s18, 3
    %p169 = por %p167, %p168
    %p170 = scmp.ne.s32.totalorder %s161, %s162
    %p171 = scmp.eq.s32.totalorder %s18, 0
    %p172 = por %p170, %p171
    %p173 = scmp.ne.s32.totalorder %s161, %s162
    %p174 = scmp.eq.s32.totalorder %s19, 3
    %p175 = por %p173, %p174
    %p177 = scmp.ne.s32.totalorder %s162, %s176
    %p178 = scmp.eq.s32.totalorder %s19, 0
    %p179 = por %p177, %p178
    %s181 = sadd.s32 %s180, 1
    %p184 = scmp.eq.s32.totalorder %s13, 3
    %p185 = scmp.ne.s32.totalorder %s180, %s182
    %p186 = scmp.eq.s32.totalorder %s13, 0
    %p187 = por %p185, %p186
    %p188 = scmp.ne.s32.totalorder %s180, %s182
    %p189 = scmp.eq.s32.totalorder %s18, 3
    %p190 = por %p188, %p189
    %p191 = scmp.ne.s32.totalorder %s182, %s183
    %p192 = scmp.eq.s32.totalorder %s18, 0
    %p193 = por %p191, %p192
    %p194 = scmp.ne.s32.totalorder %s182, %s183
    %p195 = scmp.eq.s32.totalorder %s19, 3
    %p196 = por %p194, %p195
    %p198 = scmp.ne.s32.totalorder %s183, %s197
    %p199 = scmp.eq.s32.totalorder %s19, 0
    %p200 = por %p198, %p199
    %s201 = ssub.s32 %s20, %s32
    %s202 = ssub.s32 %s21, %s28
    %s203 = sor.u32 %s201, %s202
    %p204 = scmp.eq.s32.totalorder %s203, 0
    %s206 = sadd.s32 %s205, 1
    %s207 = scalar_select %p204, %s205, %s206
    %p210 = pneg %p204
    %p211 = scmp.eq.s32.totalorder %s13, 3
    %p212 = por %p210, %p211
    %p213 = scmp.ne.s32.totalorder %s205, %s208
    %p214 = scmp.eq.s32.totalorder %s13, 0
    %p215 = por %p213, %p214
    %p216 = scmp.ne.s32.totalorder %s205, %s208
    %p217 = scmp.eq.s32.totalorder %s18, 3
    %p218 = por %p216, %p217
    %p219 = scmp.ne.s32.totalorder %s208, %s209
    %p220 = scmp.eq.s32.totalorder %s18, 0
    %p221 = por %p219, %p220
    %p222 = scmp.ne.s32.totalorder %s208, %s209
    %p223 = scmp.eq.s32.totalorder %s19, 3
    %p224 = por %p222, %p223
    %p226 = scmp.ne.s32.totalorder %s209, %s225
    %p227 = scmp.eq.s32.totalorder %s19, 0
    %p228 = por %p226, %p227
    %p229 = scmp.le.s32.totalorder 1, %s13
    %p230 = scmp.lt.s32.totalorder %s13, 5
    %p231 = pnand %p229, %p230
    %p232 = pneg %p231
    // Predicated region
    $region9: #{tpu_custom_call.1} parent=5 // pred_check
      _
    $region10: #{tpu_custom_call.1} parent=5 // pred_check_branch
      %234 = sbr.rel (%p231) target = $region12
    $region11: #{tpu_custom_call.1} parent=5 // pred_region
      %s235 = ssub.s32 %s13, 1
      // Predicated region
      $region13: #{tpu_custom_call.1} parent=11 // pred_check
        %p236 = pneg %p130
      $region14: #{tpu_custom_call.1} parent=11 // pred_check_branch
        %238 = sbr.rel (%p236) target = $region16
      $region15: #{tpu_custom_call.1} parent=11 // pred_region
        _
      $region16: #{tpu_custom_call.1} parent=11 // pred_fallthru
        _
      // Predicated region
      $region17: #{tpu_custom_call.1} parent=11 // pred_check
        %p239 = pneg %p151
      $region18: #{tpu_custom_call.1} parent=11 // pred_check_branch
        %241 = sbr.rel (%p239) target = $region20
      $region19: #{tpu_custom_call.1} parent=11 // pred_region
        _
      $region20: #{tpu_custom_call.1} parent=11 // pred_fallthru
        _
      // Predicated region
      $region21: #{tpu_custom_call.1} parent=11 // pred_check
        %p242 = pneg %p172
      $region22: #{tpu_custom_call.1} parent=11 // pred_check_branch
        %244 = sbr.rel (%p242) target = $region24
      $region23: #{tpu_custom_call.1} parent=11 // pred_region
        _
      $region24: #{tpu_custom_call.1} parent=11 // pred_fallthru
        _
      // Predicated region
      $region25: #{tpu_custom_call.1} parent=11 // pred_check
        %p245 = pneg %p193
      $region26: #{tpu_custom_call.1} parent=11 // pred_check_branch
        %247 = sbr.rel (%p245) target = $region28
      $region27: #{tpu_custom_call.1} parent=11 // pred_region
        _
      $region28: #{tpu_custom_call.1} parent=11 // pred_fallthru
        _
    $region12: #{tpu_custom_call.1} parent=5 // pred_fallthru
      _
    %p248 = scmp.lt.s32.totalorder %s13, 4
    // Predicated region
    $region29: #{tpu_custom_call.1} parent=5 // pred_check
      %p249 = pneg %p248
    $region30: #{tpu_custom_call.1} parent=5 // pred_check_branch
      %251 = sbr.rel (%p249) target = $region32
    $region31: #{tpu_custom_call.1} parent=5 // pred_region
      // Predicated region
      $region33: #{tpu_custom_call.1} parent=31 // pred_check
        %p252 = pneg %p47
      $region34: #{tpu_custom_call.1} parent=31 // pred_check_branch
        %254 = sbr.rel (%p252) target = $region36
      $region35: #{tpu_custom_call.1} parent=31 // pred_region
        %p255 = scmp.lt.s32.totalorder %s20, 1
        %s256 = scalar_select %p255, %s20, 1
        %p257 = scmp.lt.s32.totalorder %s21, 1
        %s258 = scalar_select %p257, %s21, 1
        %s259 = smul.addr %s258, 24
        %s260 = smul.addr %s256, 48
        %s261 = sadd.s32 %s259, %s260
        %s262 = smul.addr %s261, 8
        %s263 = scalar_lea.vmem %s0, %s262
      $region36: #{tpu_custom_call.1} parent=31 // pred_fallthru
        _
      // Predicated region
      $region37: #{tpu_custom_call.1} parent=31 // pred_check
        %p264 = pneg %p75
      $region38: #{tpu_custom_call.1} parent=31 // pred_check_branch
        %266 = sbr.rel (%p264) target = $region40
      $region39: #{tpu_custom_call.1} parent=31 // pred_region
        %p267 = scmp.lt.s32.totalorder %s20, 1
        %s268 = scalar_select %p267, %s20, 1
        %p269 = scmp.lt.s32.totalorder %s21, 1
        %s270 = scalar_select %p269, %s21, 1
        %s271 = smul.addr %s270, 3
        %s272 = smul.addr %s268, 6
        %s273 = sadd.s32 %s271, %s272
        %s274 = smul.addr %s273, 8
        %s275 = scalar_lea.vmem %s1, %s274
      $region40: #{tpu_custom_call.1} parent=31 // pred_fallthru
        _
      // Predicated region
      $region41: #{tpu_custom_call.1} parent=31 // pred_check
        %p276 = pneg %p103
      $region42: #{tpu_custom_call.1} parent=31 // pred_check_branch
        %278 = sbr.rel (%p276) target = $region44
      $region43: #{tpu_custom_call.1} parent=31 // pred_region
        %p279 = scmp.lt.s32.totalorder %s20, 1
        %s280 = scalar_select %p279, %s20, 1
        %p281 = scmp.lt.s32.totalorder %s21, 1
        %s282 = scalar_select %p281, %s21, 1
        %s283 = smul.addr %s282, 3
        %s284 = smul.addr %s280, 6
        %s285 = sadd.s32 %s283, %s284
        %s286 = smul.addr %s285, 8
        %s287 = scalar_lea.vmem %s2, %s286
      $region44: #{tpu_custom_call.1} parent=31 // pred_fallthru
        _
    $region32: #{tpu_custom_call.1} parent=5 // pred_fallthru
      _
    %p288 = scmp.le.s32.totalorder 1, %s13
    %p289 = scmp.lt.s32.totalorder %s13, 5
    %p290 = pnand %p288, %p289
    %p291 = pneg %p290
    // Predicated region
    $region45: #{tpu_custom_call.1} parent=5 // pred_check
      _
    $region46: #{tpu_custom_call.1} parent=5 // pred_check_branch
      %293 = sbr.rel (%p290) target = $region48
    $region47: #{tpu_custom_call.1} parent=5 // pred_region
      %s294 = ssub.s32 %s13, 1
      %p295 = scmp.lt.s32.totalorder %s22, 1
      %s296 = scalar_select %p295, %s22, 1
      %p297 = scmp.lt.s32.totalorder %s23, 1
      %s298 = scalar_select %p297, %s23, 1
      %s299 = smul.addr %s298, 24
      %s300 = smul.addr %s296, 48
      %s301 = sadd.s32 %s299, %s300
      %s302 = smul.addr %s301, 8
      %s303 = scalar_lea.vmem %s0, %s302
      %p304 = pneg %p53
      %p305 = pneg %p50
      %p306 = scmp.lt.s32.totalorder %s22, 1
      %s307 = scalar_select %p306, %s22, 1
      %p308 = scmp.lt.s32.totalorder %s23, 1
      %s309 = scalar_select %p308, %s23, 1
      %s310 = smul.addr %s309, 3
      %s311 = smul.addr %s307, 6
      %s312 = sadd.s32 %s310, %s311
      %s313 = smul.addr %s312, 8
      %s314 = scalar_lea.vmem %s1, %s313
      %p315 = pneg %p81
      %p316 = pneg %p78
      %p317 = scmp.lt.s32.totalorder %s22, 1
      %s318 = scalar_select %p317, %s22, 1
      %p319 = scmp.lt.s32.totalorder %s23, 1
      %s320 = scalar_select %p319, %s23, 1
      %s321 = smul.addr %s320, 3
      %s322 = smul.addr %s318, 6
      %s323 = sadd.s32 %s321, %s322
      %s324 = smul.addr %s323, 8
      %s325 = scalar_lea.vmem %s2, %s324
      %p326 = pneg %p109
      %p327 = pneg %p106
      %p328 = pneg %p130
      %p329 = pneg %p127
      %p330 = pneg %p151
      %p331 = pneg %p148
      %p332 = pneg %p172
      %p333 = pneg %p169
      %p334 = pneg %p193
      %p335 = pneg %p190
      %p336 = pneg %p221
      %p337 = pneg %p218
      %s338 = smul.u32 8, %s23
      %p339 = scmp.lt.s32.totalorder %s22, 1
      %s340 = scalar_select %p339, %s22, 1
      %p341 = scmp.lt.s32.totalorder %s338, 15
      %s342 = scalar_select %p341, %s338, 15
      %s343 = smul.addr %s342, 2
      %s344 = smul.addr %s340, 32
      %s345 = sadd.s32 %s343, %s344
      %s346 = smul.addr %s345, 8
      %s347 = scalar_lea.vmem %s7, %s346
      %p348 = scmp.lt.s32.totalorder %s22, 1
      %s349 = scalar_select %p348, %s22, 1
      %p350 = scmp.lt.s32.totalorder %s23, 1
      %s351 = scalar_select %p350, %s23, 1
      %s352 = smul.addr %s351, 24
      %s353 = smul.addr %s349, 48
      %s354 = sadd.s32 %s352, %s353
      %s355 = smul.addr %s354, 8
      %s356 = scalar_lea.vmem %s0, %s355
      %p357 = scmp.lt.s32.totalorder %s22, 1
      %s358 = scalar_select %p357, %s22, 1
      %p359 = scmp.lt.s32.totalorder %s23, 1
      %s360 = scalar_select %p359, %s23, 1
      %s361 = smul.addr %s360, 3
      %s362 = smul.addr %s358, 6
      %s363 = sadd.s32 %s361, %s362
      %s364 = smul.addr %s363, 8
      %s365 = scalar_lea.vmem %s1, %s364
      %p366 = scmp.lt.s32.totalorder %s22, 1
      %s367 = scalar_select %p366, %s22, 1
      %p368 = scmp.lt.s32.totalorder %s23, 1
      %s369 = scalar_select %p368, %s23, 1
      %s370 = smul.addr %s369, 3
      %s371 = smul.addr %s367, 6
      %s372 = sadd.s32 %s370, %s371
      %s373 = smul.addr %s372, 8
      %s374 = scalar_lea.vmem %s2, %s373
      %s375 = smul.u32 8, %s23
      %p376 = scmp.lt.s32.totalorder %s22, 1
      %s377 = scalar_select %p376, %s22, 1
      %p378 = scmp.lt.s32.totalorder %s375, 15
      %s379 = scalar_select %p378, %s375, 15
      %s380 = smul.addr %s379, 2
      %s381 = smul.addr %s377, 32
      %s382 = sadd.s32 %s380, %s381
      %s383 = smul.addr %s382, 8
      %s384 = scalar_lea.vmem %s7, %s383
      %s385 = smul.u32 8, %s23
      %v386 = vld [vmem:[%s356] sm:$0xff]
      %v387 = vld [vmem:[%s356 + $0x8] sm:$0xff]
      %v388 = vld [vmem:[%s356 + $0x10] sm:$0xff]
      %v389 = vld [vmem:[%s356 + $0x18] sm:$0xff]
      %v390 = vld [vmem:[%s356 + $0x20] sm:$0xff]
      %v391 = vld [vmem:[%s356 + $0x28] sm:$0xff]
      %v392 = vld [vmem:[%s356 + $0x30] sm:$0xff]
      %v393 = vld [vmem:[%s356 + $0x38] sm:$0xff]
      %v394 = vld [vmem:[%s356 + $0x40] sm:$0xff]
      %v395 = vld [vmem:[%s356 + $0x48] sm:$0xff]
      %v396 = vld [vmem:[%s356 + $0x50] sm:$0xff]
      %v397 = vld [vmem:[%s356 + $0x58] sm:$0xff]
      %v398 = vld [vmem:[%s356 + $0x60] sm:$0xff]
      %v399 = vld [vmem:[%s356 + $0x68] sm:$0xff]
      %v400 = vld [vmem:[%s356 + $0x70] sm:$0xff]
      %v401 = vld [vmem:[%s356 + $0x78] sm:$0xff]
      %v402 = vld [vmem:[%s356 + $0x80] sm:$0xff]
      %v403 = vld [vmem:[%s356 + $0x88] sm:$0xff]
      %v404 = vld [vmem:[%s356 + $0x90] sm:$0xff]
      %v405 = vld [vmem:[%s356 + $0x98] sm:$0xff]
      %v406 = vld [vmem:[%s356 + $0xa0] sm:$0xff]
      %v407 = vld [vmem:[%s356 + $0xa8] sm:$0xff]
      %v408 = vld [vmem:[%s356 + $0xb0] sm:$0xff]
      %v409 = vld [vmem:[%s356 + $0xb8] sm:$0xff]
      %v410 = vld [vmem:[%s365] sm:$0xff]
      %v411 = vld [vmem:[%s365 + $0x8] sm:$0xff]
      %v412 = vld [vmem:[%s365 + $0x10] sm:$0xff]
      %vm413 = vcmask 31744
      %414 = vst.msk [vmem:[#allocation2] sm:$0xff] %vm413, %v410
      %415 = vst.msk [vmem:[#allocation2 + $0x8] sm:$0xff] %vm413, %v411
      %416 = vst.msk [vmem:[#allocation2 + $0x10] sm:$0xff] %vm413, %v412
      %417 = vst.msk [vmem:[#allocation2 + $0x18] sm:$0xff] %vm413, %v386
      %418 = vst.msk [vmem:[#allocation2 + $0x20] sm:$0xff] %vm413, %v387
      %419 = vst.msk [vmem:[#allocation2 + $0x28] sm:$0xff] %vm413, %v388
      %420 = vst.msk [vmem:[#allocation2 + $0x30] sm:$0xff] %vm413, %v389
      %421 = vst.msk [vmem:[#allocation2 + $0x38] sm:$0xff] %vm413, %v390
      %422 = vst.msk [vmem:[#allocation2 + $0x40] sm:$0xff] %vm413, %v391
      %423 = vst.msk [vmem:[#allocation2 + $0x48] sm:$0xff] %vm413, %v392
      %424 = vst.msk [vmem:[#allocation2 + $0x50] sm:$0xff] %vm413, %v393
      %425 = vst.msk [vmem:[#allocation2 + $0x58] sm:$0xff] %vm413, %v394
      %426 = vst.msk [vmem:[#allocation2 + $0x60] sm:$0xff] %vm413, %v395
      %427 = vst.msk [vmem:[#allocation2 + $0x68] sm:$0xff] %vm413, %v396
      %428 = vst.msk [vmem:[#allocation2 + $0x70] sm:$0xff] %vm413, %v397
      %429 = vst.msk [vmem:[#allocation2 + $0x78] sm:$0xff] %vm413, %v398
      %430 = vst.msk [vmem:[#allocation2 + $0x80] sm:$0xff] %vm413, %v399
      %431 = vst.msk [vmem:[#allocation2 + $0x88] sm:$0xff] %vm413, %v400
      %432 = vst.msk [vmem:[#allocation2 + $0x90] sm:$0xff] %vm413, %v401
      %433 = vst.msk [vmem:[#allocation2 + $0x98] sm:$0xff] %vm413, %v402
      %434 = vst.msk [vmem:[#allocation2 + $0xa0] sm:$0xff] %vm413, %v403
      %435 = vst.msk [vmem:[#allocation2 + $0xa8] sm:$0xff] %vm413, %v404
      %436 = vst.msk [vmem:[#allocation2 + $0xb0] sm:$0xff] %vm413, %v405
      %437 = vst.msk [vmem:[#allocation2 + $0xb8] sm:$0xff] %vm413, %v406
      %438 = vst.msk [vmem:[#allocation2 + $0xc0] sm:$0xff] %vm413, %v407
      %439 = vst.msk [vmem:[#allocation2 + $0xc8] sm:$0xff] %vm413, %v408
      %440 = vst.msk [vmem:[#allocation2 + $0xd0] sm:$0xff] %vm413, %v409
      %v441 = vld [vmem:[%s374] sm:$0xff]
      %v442 = vld [vmem:[%s374 + $0x8] sm:$0xff]
      %v443 = vld [vmem:[%s374 + $0x10] sm:$0xff]
      %444 = vst.msk [vmem:[#allocation2 + $0xd8] sm:$0xff] %vm413, %v441
      %445 = vst.msk [vmem:[#allocation2 + $0xe0] sm:$0xff] %vm413, %v442
      %446 = vst.msk [vmem:[#allocation2 + $0xe8] sm:$0xff] %vm413, %v443
      %v447 = vld [vmem:[#allocation2] sm:$0xff]
      %v448 = vld [vmem:[#allocation2 + $0x8] sm:$0xff]
      %v449 = vld [vmem:[#allocation2 + $0x10] sm:$0xff]
      %v450 = vld [vmem:[#allocation2 + $0x18] sm:$0xff]
      %v451 = vld [vmem:[#allocation2 + $0x20] sm:$0xff]
      %v452 = vld [vmem:[#allocation2 + $0x28] sm:$0xff]
      %v453 = vld [vmem:[#allocation2 + $0x30] sm:$0xff]
      %v454 = vld [vmem:[#allocation2 + $0x38] sm:$0xff]
      %v455 = vld [vmem:[#allocation2 + $0x40] sm:$0xff]
      %v456 = vld [vmem:[#allocation2 + $0x48] sm:$0xff]
      %v457 = vld [vmem:[#allocation2 + $0x50] sm:$0xff]
      %v458 = vld [vmem:[#allocation2 + $0x58] sm:$0xff]
      %v459 = vld [vmem:[#allocation2 + $0x60] sm:$0xff]
      %v460 = vld [vmem:[#allocation2 + $0x68] sm:$0xff]
      %v461 = vld [vmem:[#allocation2 + $0x70] sm:$0xff]
      %v462 = vld [vmem:[#allocation2 + $0x78] sm:$0xff]
      %v463 = vld [vmem:[#allocation2 + $0x80] sm:$0xff]
      %v464 = vld [vmem:[#allocation2 + $0x88] sm:$0xff]
      %v465 = vld [vmem:[#allocation2 + $0x90] sm:$0xff]
      %v466 = vld [vmem:[#allocation2 + $0x98] sm:$0xff]
      %v467 = vld [vmem:[#allocation2 + $0xa0] sm:$0xff]
      %v468 = vld [vmem:[#allocation2 + $0xa8] sm:$0xff]
      %v469 = vld [vmem:[#allocation2 + $0xb0] sm:$0xff]
      %v470 = vld [vmem:[#allocation2 + $0xb8] sm:$0xff]
      %v471 = vld [vmem:[#allocation2 + $0xc0] sm:$0xff]
      %v472 = vld [vmem:[#allocation2 + $0xc8] sm:$0xff]
      %v473 = vld [vmem:[#allocation2 + $0xd0] sm:$0xff]
      %v474 = vld [vmem:[#allocation2 + $0xd8] sm:$0xff]
      %v475 = vld [vmem:[#allocation2 + $0xe0] sm:$0xff]
      %v476 = vld [vmem:[#allocation2 + $0xe8] sm:$0xff]
      %v477 = vld [vmem:[%s3] sm:$0xf]
      %v478 = vrot.slane %v447, 1
      %v479 = vrot.slane %v448, 1
      %v480 = vrot.slane %v449, 1
      %v481 = vrot.slane %v450, 1
      %v482 = vrot.slane %v451, 1
      %v483 = vrot.slane %v452, 1
      %v484 = vrot.slane %v453, 1
      %v485 = vrot.slane %v454, 1
      %v486 = vrot.slane %v455, 1
      %v487 = vrot.slane %v456, 1
      %v488 = vrot.slane %v457, 1
      %v489 = vrot.slane %v458, 1
      %v490 = vrot.slane %v459, 1
      %v491 = vrot.slane %v460, 1
      %v492 = vrot.slane %v461, 1
      %v493 = vrot.slane %v462, 1
      %v494 = vrot.slane %v463, 1
      %v495 = vrot.slane %v464, 1
      %v496 = vrot.slane %v465, 1
      %v497 = vrot.slane %v466, 1
      %v498 = vrot.slane %v467, 1
      %v499 = vrot.slane %v468, 1
      %v500 = vrot.slane %v469, 1
      %v501 = vrot.slane %v470, 1
      %v502 = vrot.slane %v471, 1
      %v503 = vrot.slane %v472, 1
      %v504 = vrot.slane %v473, 1
      %v505 = vrot.slane %v474, 1
      %v506 = vrot.slane %v475, 1
      %v507 = vrot.slane %v476, 1
      %v508 = vlaneseq
      %v509 = vshrl.u32 %v508, 7
      %vm510 = vcmp.lt.s32.totalorder %v509, 7
      %v511 = vsel %vm510, %v506, %v507
      %v512 = vsel %vm510, %v505, %v506
      %v513 = vsel %vm510, %v504, %v505
      %v514 = vsel %vm510, %v503, %v504
      %v515 = vsel %vm510, %v502, %v503
      %v516 = vsel %vm510, %v501, %v502
      %v517 = vsel %vm510, %v500, %v501
      %v518 = vsel %vm510, %v499, %v500
      %v519 = vsel %vm510, %v498, %v499
      %v520 = vsel %vm510, %v497, %v498
      %v521 = vsel %vm510, %v496, %v497
      %v522 = vsel %vm510, %v495, %v496
      %v523 = vsel %vm510, %v494, %v495
      %v524 = vsel %vm510, %v493, %v494
      %v525 = vsel %vm510, %v492, %v493
      %v526 = vsel %vm510, %v491, %v492
      %v527 = vsel %vm510, %v490, %v491
      %v528 = vsel %vm510, %v489, %v490
      %v529 = vsel %vm510, %v488, %v489
      %v530 = vsel %vm510, %v487, %v488
      %v531 = vsel %vm510, %v486, %v487
      %v532 = vsel %vm510, %v485, %v486
      %v533 = vsel %vm510, %v484, %v485
      %v534 = vsel %vm510, %v483, %v484
      %v535 = vsel %vm510, %v482, %v483
      %v536 = vsel %vm510, %v481, %v482
      %v537 = vsel %vm510, %v480, %v481
      %v538 = vsel %vm510, %v479, %v480
      %v539 = vsel %vm510, %v478, %v479
      %v540 = vsel %vm510, %v507, %v478
      %s541 = scalar_lea.vmem %s3, 4
      %v542 = vld [vmem:[%s541] sm:$0xf]
      %v544 = vsel %vm413, %v539, 0
      %v547 = vsel %vm413, %v538, 0
      %v550 = vsel %vm413, %v537, 0
      %v553 = vsel %vm413, %v536, 0
      %v556 = vsel %vm413, %v535, 0
      %v559 = vsel %vm413, %v534, 0
      %v562 = vsel %vm413, %v533, 0
      %v565 = vsel %vm413, %v532, 0
      %v568 = vsel %vm413, %v531, 0
      %v571 = vsel %vm413, %v530, 0
      %v574 = vsel %vm413, %v529, 0
      %v577 = vsel %vm413, %v528, 0
      %v580 = vsel %vm413, %v527, 0
      %v583 = vsel %vm413, %v526, 0
      %v586 = vsel %vm413, %v525, 0
      %v589 = vsel %vm413, %v524, 0
      %v592 = vsel %vm413, %v523, 0
      %v595 = vsel %vm413, %v522, 0
      %v598 = vsel %vm413, %v521, 0
      %v601 = vsel %vm413, %v520, 0
      %v604 = vsel %vm413, %v519, 0
      %v607 = vsel %vm413, %v518, 0
      %v610 = vsel %vm413, %v517, 0
      %v613 = vsel %vm413, %v516, 0
      %v616 = vsel %vm413, %v515, 0
      %v619 = vsel %vm413, %v514, 0
      %v622 = vsel %vm413, %v513, 0
      %v625 = vsel %vm413, %v512, 0
      %v628 = vsel %vm413, %v511, 0
      %v631 = vsel %vm413, %v540, 0
      %vm633 = vcmask 1043456
      %v635 = vsel %vm633, %v542, 0
      %637 = vmatprep.subr.mxu0 0.0
      %638 = vmatpush1.msra.mxu0 %v635
      %639 = vmatprep.subr.mxu0 0.0
      %640 = vmatpush1.msra.mxu0 0.0
      %641 = vmatprep.subr.mxu0 0.0
      %642 = vmatpush1.msra.mxu0 0.0
      %643 = vmatprep.subr.mxu0 0.0
      %644 = vmatpush1.msra.mxu0 0.0
      %645 = vmatprep.subr.mxu0 0.0
      %646 = vmatpush1.msra.mxu0 0.0
      %647 = vmatprep.subr.mxu0 0.0
      %648 = vmatpush1.msra.mxu0 0.0
      %649 = vmatprep.subr.mxu0 0.0
      %650 = vmatpush1.msra.mxu0 0.0
      %651 = vmatprep.subr.mxu0 0.0
      %652 = vmatpush1.msra.mxu0 0.0
      %653 = vmatprep.subr.mxu0 0.0
      %654 = vmatpush1.msra.mxu0 0.0
      %655 = vmatprep.subr.mxu0 0.0
      %656 = vmatpush1.msra.mxu0 0.0
      %657 = vmatprep.subr.mxu0 0.0
      %658 = vmatpush1.msra.mxu0 0.0
      %659 = vmatprep.subr.mxu0 0.0
      %660 = vmatpush1.msra.mxu0 0.0
      %661 = vmatprep.subr.mxu0 0.0
      %662 = vmatpush1.msra.mxu0 0.0
      %663 = vmatprep.subr.mxu0 0.0
      %664 = vmatpush1.msra.mxu0 0.0
      %665 = vmatprep.subr.mxu0 0.0
      %666 = vmatpush1.msra.mxu0 0.0
      %667 = vmatprep.subr.mxu0 0.0
      %668 = vmatpush1.msra.mxu0 0.0
      %669 = vmatprep.subr.mxu0 0.0
      %670 = vmatpush1.msra.mxu0 0.0
      %671 = vmatprep.subr.mxu0 0.0
      %672 = vmatpush1.msra.mxu0 0.0
      %673 = vmatprep.subr.mxu0 0.0
      %674 = vmatpush1.msra.mxu0 0.0
      %675 = vmatprep.subr.mxu0 0.0
      %676 = vmatpush1.msra.mxu0 0.0
      %677 = vmatprep.subr.mxu0 0.0
      %678 = vmatpush1.msra.mxu0 0.0
      %679 = vmatprep.subr.mxu0 0.0
      %680 = vmatpush1.msra.mxu0 0.0
      %681 = vmatprep.subr.mxu0 0.0
      %682 = vmatpush1.msra.mxu0 0.0
      %683 = vmatprep.subr.mxu0 0.0
      %684 = vmatpush1.msra.mxu0 0.0
      %685 = vmatprep.subr.mxu0 0.0
      %686 = vmatpush1.msra.mxu0 0.0
      %687 = vmatprep.subr.mxu0 0.0
      %688 = vmatpush1.msra.mxu0 0.0
      %689 = vmatprep.subr.mxu0 0.0
      %690 = vmatpush1.msra.mxu0 0.0
      %691 = vmatprep.subr.mxu0 0.0
      %692 = vmatpush1.msra.mxu0 0.0
      %693 = vmatprep.subr.mxu0 0.0
      %694 = vmatpush1.msra.mxu0 0.0
      %695 = vmatprep.subr.mxu0 0.0
      %696 = vmatpush1.msra.mxu0 0.0
      %697 = vmatprep.subr.mxu0 0.0
      %698 = vmatpush1.msra.mxu0 0.0
      %699 = vmatprep.subr.mxu0 0.0
      %700 = vmatpush1.msra.mxu0 0.0
      %701 = vmatprep.mubr.f32.mxu0 0.0
      %702 = vmatmul.mubr.f32.gmra.mrb[0].mxu0 %v544
      %v703 = vpop.f32.mrb[0].mxu0
      %v704 = vadd.f32 0.0, %v703
      %v705 = vpop.f32.mrb[0].mxu0
      %706 = vmatprep.mubr.f32.mxu0 0.0
      %707 = vmatmul.mubr.f32.gmra.mrb[0].mxu0 %v547
      %v708 = vpop.f32.mrb[0].mxu0
      %v709 = vadd.f32 0.0, %v708
      %v710 = vpop.f32.mrb[0].mxu0
      %711 = vmatprep.mubr.f32.mxu0 0.0
      %712 = vmatmul.mubr.f32.gmra.mrb[0].mxu0 %v550
      %v713 = vpop.f32.mrb[0].mxu0
      %v714 = vadd.f32 0.0, %v713
      %v715 = vpop.f32.mrb[0].mxu0
      %716 = vmatprep.mubr.f32.mxu0 0.0
      %717 = vmatmul.mubr.f32.gmra.mrb[0].mxu0 %v553
      %v718 = vpop.f32.mrb[0].mxu0
      %v719 = vadd.f32 0.0, %v718
      %v720 = vpop.f32.mrb[0].mxu0
      %721 = vmatprep.mubr.f32.mxu0 0.0
      %722 = vmatmul.mubr.f32.gmra.mrb[0].mxu0 %v556
      %v723 = vpop.f32.mrb[0].mxu0
      %v724 = vadd.f32 0.0, %v723
      %v725 = vpop.f32.mrb[0].mxu0
      %726 = vmatprep.mubr.f32.mxu0 0.0
      %727 = vmatmul.mubr.f32.gmra.mrb[0].mxu0 %v559
      %v728 = vpop.f32.mrb[0].mxu0
      %v729 = vadd.f32 0.0, %v728
      %v730 = vpop.f32.mrb[0].mxu0
      %731 = vmatprep.mubr.f32.mxu0 0.0
      %732 = vmatmul.mubr.f32.gmra.mrb[0].mxu0 %v562
      %v733 = vpop.f32.mrb[0].mxu0
      %v734 = vadd.f32 0.0, %v733
      %v735 = vpop.f32.mrb[0].mxu0
      %736 = vmatprep.mubr.f32.mxu0 0.0
      %737 = vmatmul.mubr.f32.gmra.mrb[0].mxu0 %v565
      %v738 = vpop.f32.mrb[0].mxu0
      %v739 = vadd.f32 0.0, %v738
      %v740 = vpop.f32.mrb[0].mxu0
      %741 = vmatprep.mubr.f32.mxu0 0.0
      %742 = vmatmul.mubr.f32.gmra.mrb[0].mxu0 %v568
      %v743 = vpop.f32.mrb[0].mxu0
      %v744 = vadd.f32 0.0, %v743
      %v745 = vpop.f32.mrb[0].mxu0
      %746 = vmatprep.mubr.f32.mxu0 0.0
      %747 = vmatmul.mubr.f32.gmra.mrb[0].mxu0 %v571
      %v748 = vpop.f32.mrb[0].mxu0
      %v749 = vadd.f32 0.0, %v748
      %v750 = vpop.f32.mrb[0].mxu0
      %751 = vmatprep.mubr.f32.mxu0 0.0
      %752 = vmatmul.mubr.f32.gmra.mrb[0].mxu0 %v574
      %v753 = vpop.f32.mrb[0].mxu0
      %v754 = vadd.f32 0.0, %v753
      %v755 = vpop.f32.mrb[0].mxu0
      %756 = vmatprep.mubr.f32.mxu0 0.0
      %757 = vmatmul.mubr.f32.gmra.mrb[0].mxu0 %v577
      %v758 = vpop.f32.mrb[0].mxu0
      %v759 = vadd.f32 0.0, %v758
      %v760 = vpop.f32.mrb[0].mxu0
      %761 = vmatprep.mubr.f32.mxu0 0.0
      %762 = vmatmul.mubr.f32.gmra.mrb[0].mxu0 %v580
      %v763 = vpop.f32.mrb[0].mxu0
      %v764 = vadd.f32 0.0, %v763
      %v765 = vpop.f32.mrb[0].mxu0
      %766 = vmatprep.mubr.f32.mxu0 0.0
      %767 = vmatmul.mubr.f32.gmra.mrb[0].mxu0 %v583
      %v768 = vpop.f32.mrb[0].mxu0
      %v769 = vadd.f32 0.0, %v768
      %v770 = vpop.f32.mrb[0].mxu0
      %771 = vmatprep.mubr.f32.mxu0 0.0
      %772 = vmatmul.mubr.f32.gmra.mrb[0].mxu0 %v586
      %v773 = vpop.f32.mrb[0].mxu0
      %v774 = vadd.f32 0.0, %v773
      %v775 = vpop.f32.mrb[0].mxu0
      %776 = vmatprep.mubr.f32.mxu0 0.0
      %777 = vmatmul.mubr.f32.gmra.mrb[0].mxu0 %v589
      %v778 = vpop.f32.mrb[0].mxu0
      %v779 = vadd.f32 0.0, %v778
      %v780 = vpop.f32.mrb[0].mxu0
      %781 = vmatprep.mubr.f32.mxu0 0.0
      %782 = vmatmul.mubr.f32.gmra.mrb[0].mxu0 %v592
      %v783 = vpop.f32.mrb[0].mxu0
      %v784 = vadd.f32 0.0, %v783
      %v785 = vpop.f32.mrb[0].mxu0
      %786 = vmatprep.mubr.f32.mxu0 0.0
      %787 = vmatmul.mubr.f32.gmra.mrb[0].mxu0 %v595
      %v788 = vpop.f32.mrb[0].mxu0
      %v789 = vadd.f32 0.0, %v788
      %v790 = vpop.f32.mrb[0].mxu0
      %791 = vmatprep.mubr.f32.mxu0 0.0
      %792 = vmatmul.mubr.f32.gmra.mrb[0].mxu0 %v598
      %v793 = vpop.f32.mrb[0].mxu0
      %v794 = vadd.f32 0.0, %v793
      %v795 = vpop.f32.mrb[0].mxu0
      %796 = vmatprep.mubr.f32.mxu0 0.0
      %797 = vmatmul.mubr.f32.gmra.mrb[0].mxu0 %v601
      %v798 = vpop.f32.mrb[0].mxu0
      %v799 = vadd.f32 0.0, %v798
      %v800 = vpop.f32.mrb[0].mxu0
      %801 = vmatprep.mubr.f32.mxu0 0.0
      %802 = vmatmul.mubr.f32.gmra.mrb[0].mxu0 %v604
      %v803 = vpop.f32.mrb[0].mxu0
      %v804 = vadd.f32 0.0, %v803
      %v805 = vpop.f32.mrb[0].mxu0
      %806 = vmatprep.mubr.f32.mxu0 0.0
      %807 = vmatmul.mubr.f32.gmra.mrb[0].mxu0 %v607
      %v808 = vpop.f32.mrb[0].mxu0
      %v809 = vadd.f32 0.0, %v808
      %v810 = vpop.f32.mrb[0].mxu0
      %811 = vmatprep.mubr.f32.mxu0 0.0
      %812 = vmatmul.mubr.f32.gmra.mrb[0].mxu0 %v610
      %v813 = vpop.f32.mrb[0].mxu0
      %v814 = vadd.f32 0.0, %v813
      %v815 = vpop.f32.mrb[0].mxu0
      %816 = vmatprep.mubr.f32.mxu0 0.0
      %817 = vmatmul.mubr.f32.gmra.mrb[0].mxu0 %v613
      %v818 = vpop.f32.mrb[0].mxu0
      %v819 = vadd.f32 0.0, %v818
      %v820 = vpop.f32.mrb[0].mxu0
      %821 = vmatprep.mubr.f32.mxu0 0.0
      %822 = vmatmul.mubr.f32.gmra.mrb[0].mxu0 %v616
      %v823 = vpop.f32.mrb[0].mxu0
      %v824 = vadd.f32 0.0, %v823
      %v825 = vpop.f32.mrb[0].mxu0
      %826 = vmatprep.mubr.f32.mxu0 0.0
      %827 = vmatmul.mubr.f32.gmra.mrb[0].mxu0 %v619
      %v828 = vpop.f32.mrb[0].mxu0
      %v829 = vadd.f32 0.0, %v828
      %v830 = vpop.f32.mrb[0].mxu0
      %831 = vmatprep.mubr.f32.mxu0 0.0
      %832 = vmatmul.mubr.f32.gmra.mrb[0].mxu0 %v622
      %v833 = vpop.f32.mrb[0].mxu0
      %v834 = vadd.f32 0.0, %v833
      %v835 = vpop.f32.mrb[0].mxu0
      %836 = vmatprep.mubr.f32.mxu0 0.0
      %837 = vmatmul.mubr.f32.gmra.mrb[0].mxu0 %v625
      %v838 = vpop.f32.mrb[0].mxu0
      %v839 = vadd.f32 0.0, %v838
      %v840 = vpop.f32.mrb[0].mxu0
      %841 = vmatprep.mubr.f32.mxu0 0.0
      %842 = vmatmul.mubr.f32.gmra.mrb[0].mxu0 %v628
      %v843 = vpop.f32.mrb[0].mxu0
      %v844 = vadd.f32 0.0, %v843
      %v845 = vpop.f32.mrb[0].mxu0
      %846 = vmatprep.mubr.f32.mxu0 0.0
      %847 = vmatmul.mubr.f32.gmra.mrb[0].mxu0 %v631
      %v848 = vpop.f32.mrb[0].mxu0
      %v849 = vadd.f32 0.0, %v848
      %v850 = vpop.f32.mrb[0].mxu0
      %851 = vdwg.mxu0
      %v853 = vsel %vm413, %v447, 0
      %v856 = vsel %vm413, %v448, 0
      %v859 = vsel %vm413, %v449, 0
      %v862 = vsel %vm413, %v450, 0
      %v865 = vsel %vm413, %v451, 0
      %v868 = vsel %vm413, %v452, 0
      %v871 = vsel %vm413, %v453, 0
      %v874 = vsel %vm413, %v454, 0
      %v877 = vsel %vm413, %v455, 0
      %v880 = vsel %vm413, %v456, 0
      %v883 = vsel %vm413, %v457, 0
      %v886 = vsel %vm413, %v458, 0
      %v889 = vsel %vm413, %v459, 0
      %v892 = vsel %vm413, %v460, 0
      %v895 = vsel %vm413, %v461, 0
      %v898 = vsel %vm413, %v462, 0
      %v901 = vsel %vm413, %v463, 0
      %v904 = vsel %vm413, %v464, 0
      %v907 = vsel %vm413, %v465, 0
      %v910 = vsel %vm413, %v466, 0
      %v913 = vsel %vm413, %v467, 0
      %v916 = vsel %vm413, %v468, 0
      %v919 = vsel %vm413, %v469, 0
      %v922 = vsel %vm413, %v470, 0
      %v925 = vsel %vm413, %v471, 0
      %v928 = vsel %vm413, %v472, 0
      %v931 = vsel %vm413, %v473, 0
      %v934 = vsel %vm413, %v474, 0
      %v937 = vsel %vm413, %v475, 0
      %v940 = vsel %vm413, %v476, 0
      %v943 = vsel %vm633, %v477, 0
      %945 = vmatprep.subr.mxu0 0.0
      %946 = vmatpush1.msra.mxu0 %v943
      %947 = vmatprep.subr.mxu0 0.0
      %948 = vmatpush1.msra.mxu0 0.0
      %949 = vmatprep.subr.mxu0 0.0
      %950 = vmatpush1.msra.mxu0 0.0
      %951 = vmatprep.subr.mxu0 0.0
      %952 = vmatpush1.msra.mxu0 0.0
      %953 = vmatprep.subr.mxu0 0.0
      %954 = vmatpush1.msra.mxu0 0.0
      %955 = vmatprep.subr.mxu0 0.0
      %956 = vmatpush1.msra.mxu0 0.0
      %957 = vmatprep.subr.mxu0 0.0
      %958 = vmatpush1.msra.mxu0 0.0
      %959 = vmatprep.subr.mxu0 0.0
      %960 = vmatpush1.msra.mxu0 0.0
      %961 = vmatprep.subr.mxu0 0.0
      %962 = vmatpush1.msra.mxu0 0.0
      %963 = vmatprep.subr.mxu0 0.0
      %964 = vmatpush1.msra.mxu0 0.0
      %965 = vmatprep.subr.mxu0 0.0
      %966 = vmatpush1.msra.mxu0 0.0
      %967 = vmatprep.subr.mxu0 0.0
      %968 = vmatpush1.msra.mxu0 0.0
      %969 = vmatprep.subr.mxu0 0.0
      %970 = vmatpush1.msra.mxu0 0.0
      %971 = vmatprep.subr.mxu0 0.0
      %972 = vmatpush1.msra.mxu0 0.0
      %973 = vmatprep.subr.mxu0 0.0
      %974 = vmatpush1.msra.mxu0 0.0
      %975 = vmatprep.subr.mxu0 0.0
      %976 = vmatpush1.msra.mxu0 0.0
      %977 = vmatprep.subr.mxu0 0.0
      %978 = vmatpush1.msra.mxu0 0.0
      %979 = vmatprep.subr.mxu0 0.0
      %980 = vmatpush1.msra.mxu0 0.0
      %981 = vmatprep.subr.mxu0 0.0
      %982 = vmatpush1.msra.mxu0 0.0
      %983 = vmatprep.subr.mxu0 0.0
      %984 = vmatpush1.msra.mxu0 0.0
      %985 = vmatprep.subr.mxu0 0.0
      %986 = vmatpush1.msra.mxu0 0.0
      %987 = vmatprep.subr.mxu0 0.0
      %988 = vmatpush1.msra.mxu0 0.0
      %989 = vmatprep.subr.mxu0 0.0
      %990 = vmatpush1.msra.mxu0 0.0
      %991 = vmatprep.subr.mxu0 0.0
      %992 = vmatpush1.msra.mxu0 0.0
      %993 = vmatprep.subr.mxu0 0.0
      %994 = vmatpush1.msra.mxu0 0.0
      %995 = vmatprep.subr.mxu0 0.0
      %996 = vmatpush1.msra.mxu0 0.0
      %997 = vmatprep.subr.mxu0 0.0
      %998 = vmatpush1.msra.mxu0 0.0
      %999 = vmatprep.subr.mxu0 0.0
      %1000 = vmatpush1.msra.mxu0 0.0
      %1001 = vmatprep.subr.mxu0 0.0
      %1002 = vmatpush1.msra.mxu0 0.0
      %1003 = vmatprep.subr.mxu0 0.0
      %1004 = vmatpush1.msra.mxu0 0.0
      %1005 = vmatprep.subr.mxu0 0.0
      %1006 = vmatpush1.msra.mxu0 0.0
      %1007 = vmatprep.subr.mxu0 0.0
      %1008 = vmatpush1.msra.mxu0 0.0
      %1009 = vmatprep.mubr.f32.mxu0 0.0
      %1010 = vmatmul.mubr.f32.gmra.mrb[0].mxu0 %v853
      %v1011 = vpop.f32.mrb[0].mxu0
      %v1012 = vadd.f32 %v704, %v1011
      %v1013 = vpop.f32.mrb[0].mxu0
      %1014 = vmatprep.mubr.f32.mxu0 0.0
      %1015 = vmatmul.mubr.f32.gmra.mrb[0].mxu0 %v856
      %v1016 = vpop.f32.mrb[0].mxu0
      %v1017 = vadd.f32 %v709, %v1016
      %v1018 = vpop.f32.mrb[0].mxu0
      %1019 = vmatprep.mubr.f32.mxu0 0.0
      %1020 = vmatmul.mubr.f32.gmra.mrb[0].mxu0 %v859
      %v1021 = vpop.f32.mrb[0].mxu0
      %v1022 = vadd.f32 %v714, %v1021
      %v1023 = vpop.f32.mrb[0].mxu0
      %1024 = vmatprep.mubr.f32.mxu0 0.0
      %1025 = vmatmul.mubr.f32.gmra.mrb[0].mxu0 %v862
      %v1026 = vpop.f32.mrb[0].mxu0
      %v1027 = vadd.f32 %v719, %v1026
      %v1028 = vpop.f32.mrb[0].mxu0
      %1029 = vmatprep.mubr.f32.mxu0 0.0
      %1030 = vmatmul.mubr.f32.gmra.mrb[0].mxu0 %v865
      %v1031 = vpop.f32.mrb[0].mxu0
      %v1032 = vadd.f32 %v724, %v1031
      %v1033 = vpop.f32.mrb[0].mxu0
      %1034 = vmatprep.mubr.f32.mxu0 0.0
      %1035 = vmatmul.mubr.f32.gmra.mrb[0].mxu0 %v868
      %v1036 = vpop.f32.mrb[0].mxu0
      %v1037 = vadd.f32 %v729, %v1036
      %v1038 = vpop.f32.mrb[0].mxu0
      %1039 = vmatprep.mubr.f32.mxu0 0.0
      %1040 = vmatmul.mubr.f32.gmra.mrb[0].mxu0 %v871
      %v1041 = vpop.f32.mrb[0].mxu0
      %v1042 = vadd.f32 %v734, %v1041
      %v1043 = vpop.f32.mrb[0].mxu0
      %1044 = vmatprep.mubr.f32.mxu0 0.0
      %1045 = vmatmul.mubr.f32.gmra.mrb[0].mxu0 %v874
      %v1046 = vpop.f32.mrb[0].mxu0
      %v1047 = vadd.f32 %v739, %v1046
      %v1048 = vpop.f32.mrb[0].mxu0
      %1049 = vmatprep.mubr.f32.mxu0 0.0
      %1050 = vmatmul.mubr.f32.gmra.mrb[0].mxu0 %v877
      %v1051 = vpop.f32.mrb[0].mxu0
      %v1052 = vadd.f32 %v744, %v1051
      %v1053 = vpop.f32.mrb[0].mxu0
      %1054 = vmatprep.mubr.f32.mxu0 0.0
      %1055 = vmatmul.mubr.f32.gmra.mrb[0].mxu0 %v880
      %v1056 = vpop.f32.mrb[0].mxu0
      %v1057 = vadd.f32 %v749, %v1056
      %v1058 = vpop.f32.mrb[0].mxu0
      %1059 = vmatprep.mubr.f32.mxu0 0.0
      %1060 = vmatmul.mubr.f32.gmra.mrb[0].mxu0 %v883
      %v1061 = vpop.f32.mrb[0].mxu0
      %v1062 = vadd.f32 %v754, %v1061
      %v1063 = vpop.f32.mrb[0].mxu0
      %1064 = vmatprep.mubr.f32.mxu0 0.0
      %1065 = vmatmul.mubr.f32.gmra.mrb[0].mxu0 %v886
      %v1066 = vpop.f32.mrb[0].mxu0
      %v1067 = vadd.f32 %v759, %v1066
      %v1068 = vpop.f32.mrb[0].mxu0
      %1069 = vmatprep.mubr.f32.mxu0 0.0
      %1070 = vmatmul.mubr.f32.gmra.mrb[0].mxu0 %v889
      %v1071 = vpop.f32.mrb[0].mxu0
      %v1072 = vadd.f32 %v764, %v1071
      %v1073 = vpop.f32.mrb[0].mxu0
      %1074 = vmatprep.mubr.f32.mxu0 0.0
      %1075 = vmatmul.mubr.f32.gmra.mrb[0].mxu0 %v892
      %v1076 = vpop.f32.mrb[0].mxu0
      %v1077 = vadd.f32 %v769, %v1076
      %v1078 = vpop.f32.mrb[0].mxu0
      %1079 = vmatprep.mubr.f32.mxu0 0.0
      %1080 = vmatmul.mubr.f32.gmra.mrb[0].mxu0 %v895
      %v1081 = vpop.f32.mrb[0].mxu0
      %v1082 = vadd.f32 %v774, %v1081
      %v1083 = vpop.f32.mrb[0].mxu0
      %1084 = vmatprep.mubr.f32.mxu0 0.0
      %1085 = vmatmul.mubr.f32.gmra.mrb[0].mxu0 %v898
      %v1086 = vpop.f32.mrb[0].mxu0
      %v1087 = vadd.f32 %v779, %v1086
      %v1088 = vpop.f32.mrb[0].mxu0
      %1089 = vmatprep.mubr.f32.mxu0 0.0
      %1090 = vmatmul.mubr.f32.gmra.mrb[0].mxu0 %v901
      %v1091 = vpop.f32.mrb[0].mxu0
      %v1092 = vadd.f32 %v784, %v1091
      %v1093 = vpop.f32.mrb[0].mxu0
      %1094 = vmatprep.mubr.f32.mxu0 0.0
      %1095 = vmatmul.mubr.f32.gmra.mrb[0].mxu0 %v904
      %v1096 = vpop.f32.mrb[0].mxu0
      %v1097 = vadd.f32 %v789, %v1096
      %v1098 = vpop.f32.mrb[0].mxu0
      %1099 = vmatprep.mubr.f32.mxu0 0.0
      %1100 = vmatmul.mubr.f32.gmra.mrb[0].mxu0 %v907
      %v1101 = vpop.f32.mrb[0].mxu0
      %v1102 = vadd.f32 %v794, %v1101
      %v1103 = vpop.f32.mrb[0].mxu0
      %1104 = vmatprep.mubr.f32.mxu0 0.0
      %1105 = vmatmul.mubr.f32.gmra.mrb[0].mxu0 %v910
      %v1106 = vpop.f32.mrb[0].mxu0
      %v1107 = vadd.f32 %v799, %v1106
      %v1108 = vpop.f32.mrb[0].mxu0
      %1109 = vmatprep.mubr.f32.mxu0 0.0
      %1110 = vmatmul.mubr.f32.gmra.mrb[0].mxu0 %v913
      %v1111 = vpop.f32.mrb[0].mxu0
      %v1112 = vadd.f32 %v804, %v1111
      %v1113 = vpop.f32.mrb[0].mxu0
      %1114 = vmatprep.mubr.f32.mxu0 0.0
      %1115 = vmatmul.mubr.f32.gmra.mrb[0].mxu0 %v916
      %v1116 = vpop.f32.mrb[0].mxu0
      %v1117 = vadd.f32 %v809, %v1116
      %v1118 = vpop.f32.mrb[0].mxu0
      %1119 = vmatprep.mubr.f32.mxu0 0.0
      %1120 = vmatmul.mubr.f32.gmra.mrb[0].mxu0 %v919
      %v1121 = vpop.f32.mrb[0].mxu0
      %v1122 = vadd.f32 %v814, %v1121
      %v1123 = vpop.f32.mrb[0].mxu0
      %1124 = vmatprep.mubr.f32.mxu0 0.0
      %1125 = vmatmul.mubr.f32.gmra.mrb[0].mxu0 %v922
      %v1126 = vpop.f32.mrb[0].mxu0
      %v1127 = vadd.f32 %v819, %v1126
      %v1128 = vpop.f32.mrb[0].mxu0
      %1129 = vmatprep.mubr.f32.mxu0 0.0
      %1130 = vmatmul.mubr.f32.gmra.mrb[0].mxu0 %v925
      %v1131 = vpop.f32.mrb[0].mxu0
      %v1132 = vadd.f32 %v824, %v1131
      %v1133 = vpop.f32.mrb[0].mxu0
      %1134 = vmatprep.mubr.f32.mxu0 0.0
      %1135 = vmatmul.mubr.f32.gmra.mrb[0].mxu0 %v928
      %v1136 = vpop.f32.mrb[0].mxu0
      %v1137 = vadd.f32 %v829, %v1136
      %v1138 = vpop.f32.mrb[0].mxu0
      %1139 = vmatprep.mubr.f32.mxu0 0.0
      %1140 = vmatmul.mubr.f32.gmra.mrb[0].mxu0 %v931
      %v1141 = vpop.f32.mrb[0].mxu0
      %v1142 = vadd.f32 %v834, %v1141
      %v1143 = vpop.f32.mrb[0].mxu0
      %1144 = vmatprep.mubr.f32.mxu0 0.0
      %1145 = vmatmul.mubr.f32.gmra.mrb[0].mxu0 %v934
      %v1146 = vpop.f32.mrb[0].mxu0
      %v1147 = vadd.f32 %v839, %v1146
      %v1148 = vpop.f32.mrb[0].mxu0
      %1149 = vmatprep.mubr.f32.mxu0 0.0
      %1150 = vmatmul.mubr.f32.gmra.mrb[0].mxu0 %v937
      %v1151 = vpop.f32.mrb[0].mxu0
      %v1152 = vadd.f32 %v844, %v1151
      %v1153 = vpop.f32.mrb[0].mxu0
      %1154 = vmatprep.mubr.f32.mxu0 0.0
      %1155 = vmatmul.mubr.f32.gmra.mrb[0].mxu0 %v940
      %v1156 = vpop.f32.mrb[0].mxu0
      %v1157 = vadd.f32 %v849, %v1156
      %v1158 = vpop.f32.mrb[0].mxu0
      %1159 = vdwg.mxu0
      %v1160 = vrot.slane %v447, 2
      %v1161 = vrot.slane %v448, 2
      %v1162 = vrot.slane %v449, 2
      %v1163 = vrot.slane %v450, 2
      %v1164 = vrot.slane %v451, 2
      %v1165 = vrot.slane %v452, 2
      %v1166 = vrot.slane %v453, 2
      %v1167 = vrot.slane %v454, 2
      %v1168 = vrot.slane %v455, 2
      %v1169 = vrot.slane %v456, 2
      %v1170 = vrot.slane %v457, 2
      %v1171 = vrot.slane %v458, 2
      %v1172 = vrot.slane %v459, 2
      %v1173 = vrot.slane %v460, 2
      %v1174 = vrot.slane %v461, 2
      %v1175 = vrot.slane %v462, 2
      %v1176 = vrot.slane %v463, 2
      %v1177 = vrot.slane %v464, 2
      %v1178 = vrot.slane %v465, 2
      %v1179 = vrot.slane %v466, 2
      %v1180 = vrot.slane %v467, 2
      %v1181 = vrot.slane %v468, 2
      %v1182 = vrot.slane %v469, 2
      %v1183 = vrot.slane %v470, 2
      %v1184 = vrot.slane %v471, 2
      %v1185 = vrot.slane %v472, 2
      %v1186 = vrot.slane %v473, 2
      %v1187 = vrot.slane %v474, 2
      %v1188 = vrot.slane %v475, 2
      %v1189 = vrot.slane %v476, 2
      %vm1190 = vcmp.lt.s32.totalorder %v509, 6
      %v1191 = vsel %vm1190, %v1188, %v1189
      %v1192 = vsel %vm1190, %v1187, %v1188
      %v1193 = vsel %vm1190, %v1186, %v1187
      %v1194 = vsel %vm1190, %v1185, %v1186
      %v1195 = vsel %vm1190, %v1184, %v1185
      %v1196 = vsel %vm1190, %v1183, %v1184
      %v1197 = vsel %vm1190, %v1182, %v1183
      %v1198 = vsel %vm1190, %v1181, %v1182
      %v1199 = vsel %vm1190, %v1180, %v1181
      %v1200 = vsel %vm1190, %v1179, %v1180
      %v1201 = vsel %vm1190, %v1178, %v1179
      %v1202 = vsel %vm1190, %v1177, %v1178
      %v1203 = vsel %vm1190, %v1176, %v1177
      %v1204 = vsel %vm1190, %v1175, %v1176
      %v1205 = vsel %vm1190, %v1174, %v1175
      %v1206 = vsel %vm1190, %v1173, %v1174
      %v1207 = vsel %vm1190, %v1172, %v1173
      %v1208 = vsel %vm1190, %v1171, %v1172
      %v1209 = vsel %vm1190, %v1170, %v1171
      %v1210 = vsel %vm1190, %v1169, %v1170
      %v1211 = vsel %vm1190, %v1168, %v1169
      %v1212 = vsel %vm1190, %v1167, %v1168
      %v1213 = vsel %vm1190, %v1166, %v1167
      %v1214 = vsel %vm1190, %v1165, %v1166
      %v1215 = vsel %vm1190, %v1164, %v1165
      %v1216 = vsel %vm1190, %v1163, %v1164
      %v1217 = vsel %vm1190, %v1162, %v1163
      %v1218 = vsel %vm1190, %v1161, %v1162
      %v1219 = vsel %vm1190, %v1160, %v1161
      %v1220 = vsel %vm1190, %v1189, %v1160
      %s1221 = scalar_lea.vmem %s3, 8
      %v1222 = vld [vmem:[%s1221] sm:$0xf]
      %v1224 = vsel %vm413, %v1219, 0
      %v1227 = vsel %vm413, %v1218, 0
      %v1230 = vsel %vm413, %v1217, 0
      %v1233 = vsel %vm413, %v1216, 0
      %v1236 = vsel %vm413, %v1215, 0
      %v1239 = vsel %vm413, %v1214, 0
      %v1242 = vsel %vm413, %v1213, 0
      %v1245 = vsel %vm413, %v1212, 0
      %v1248 = vsel %vm413, %v1211, 0
      %v1251 = vsel %vm413, %v1210, 0
      %v1254 = vsel %vm413, %v1209, 0
      %v1257 = vsel %vm413, %v1208, 0
      %v1260 = vsel %vm413, %v1207, 0
      %v1263 = vsel %vm413, %v1206, 0
      %v1266 = vsel %vm413, %v1205, 0
      %v1269 = vsel %vm413, %v1204, 0
      %v1272 = vsel %vm413, %v1203, 0
      %v1275 = vsel %vm413, %v1202, 0
      %v1278 = vsel %vm413, %v1201, 0
      %v1281 = vsel %vm413, %v1200, 0
      %v1284 = vsel %vm413, %v1199, 0
      %v1287 = vsel %vm413, %v1198, 0
      %v1290 = vsel %vm413, %v1197, 0
      %v1293 = vsel %vm413, %v1196, 0
      %v1296 = vsel %vm413, %v1195, 0
      %v1299 = vsel %vm413, %v1194, 0
      %v1302 = vsel %vm413, %v1193, 0
      %v1305 = vsel %vm413, %v1192, 0
      %v1308 = vsel %vm413, %v1191, 0
      %v1311 = vsel %vm413, %v1220, 0
      %v1314 = vsel %vm633, %v1222, 0
      %1316 = vmatprep.subr.mxu0 0.0
      %1317 = vmatpush1.msra.mxu0 %v1314
      %1318 = vmatprep.subr.mxu0 0.0
      %1319 = vmatpush1.msra.mxu0 0.0
      %1320 = vmatprep.subr.mxu0 0.0
      %1321 = vmatpush1.msra.mxu0 0.0
      %1322 = vmatprep.subr.mxu0 0.0
      %1323 = vmatpush1.msra.mxu0 0.0
      %1324 = vmatprep.subr.mxu0 0.0
      %1325 = vmatpush1.msra.mxu0 0.0
      %1326 = vmatprep.subr.mxu0 0.0
      %1327 = vmatpush1.msra.mxu0 0.0
      %1328 = vmatprep.subr.mxu0 0.0
      %1329 = vmatpush1.msra.mxu0 0.0
      %1330 = vmatprep.subr.mxu0 0.0
      %1331 = vmatpush1.msra.mxu0 0.0
      %1332 = vmatprep.subr.mxu0 0.0
      %1333 = vmatpush1.msra.mxu0 0.0
      %1334 = vmatprep.subr.mxu0 0.0
      %1335 = vmatpush1.msra.mxu0 0.0
      %1336 = vmatprep.subr.mxu0 0.0
      %1337 = vmatpush1.msra.mxu0 0.0
      %1338 = vmatprep.subr.mxu0 0.0
      %1339 = vmatpush1.msra.mxu0 0.0
      %1340 = vmatprep.subr.mxu0 0.0
      %1341 = vmatpush1.msra.mxu0 0.0
      %1342 = vmatprep.subr.mxu0 0.0
      %1343 = vmatpush1.msra.mxu0 0.0
      %1344 = vmatprep.subr.mxu0 0.0
      %1345 = vmatpush1.msra.mxu0 0.0
      %1346 = vmatprep.subr.mxu0 0.0
      %1347 = vmatpush1.msra.mxu0 0.0
      %1348 = vmatprep.subr.mxu0 0.0
      %1349 = vmatpush1.msra.mxu0 0.0
      %1350 = vmatprep.subr.mxu0 0.0
      %1351 = vmatpush1.msra.mxu0 0.0
      %1352 = vmatprep.subr.mxu0 0.0
      %1353 = vmatpush1.msra.mxu0 0.0
      %1354 = vmatprep.subr.mxu0 0.0
      %1355 = vmatpush1.msra.mxu0 0.0
      %1356 = vmatprep.subr.mxu0 0.0
      %1357 = vmatpush1.msra.mxu0 0.0
      %1358 = vmatprep.subr.mxu0 0.0
      %1359 = vmatpush1.msra.mxu0 0.0
      %1360 = vmatprep.subr.mxu0 0.0
      %1361 = vmatpush1.msra.mxu0 0.0
      %1362 = vmatprep.subr.mxu0 0.0
      %1363 = vmatpush1.msra.mxu0 0.0
      %1364 = vmatprep.subr.mxu0 0.0
      %1365 = vmatpush1.msra.mxu0 0.0
      %1366 = vmatprep.subr.mxu0 0.0
      %1367 = vmatpush1.msra.mxu0 0.0
      %1368 = vmatprep.subr.mxu0 0.0
      %1369 = vmatpush1.msra.mxu0 0.0
      %1370 = vmatprep.subr.mxu0 0.0
      %1371 = vmatpush1.msra.mxu0 0.0
      %1372 = vmatprep.subr.mxu0 0.0
      %1373 = vmatpush1.msra.mxu0 0.0
      %1374 = vmatprep.subr.mxu0 0.0
      %1375 = vmatpush1.msra.mxu0 0.0
      %1376 = vmatprep.subr.mxu0 0.0
      %1377 = vmatpush1.msra.mxu0 0.0
      %1378 = vmatprep.subr.mxu0 0.0
      %1379 = vmatpush1.msra.mxu0 0.0
      %1380 = vmatprep.mubr.f32.mxu0 0.0
      %1381 = vmatmul.mubr.f32.gmra.mrb[0].mxu0 %v1224
      %v1382 = vpop.f32.mrb[0].mxu0
      %v1383 = vadd.f32 0.0, %v1382
      %v1384 = vpop.f32.mrb[0].mxu0
      %1385 = vmatprep.mubr.f32.mxu0 0.0
      %1386 = vmatmul.mubr.f32.gmra.mrb[0].mxu0 %v1227
      %v1387 = vpop.f32.mrb[0].mxu0
      %v1388 = vadd.f32 0.0, %v1387
      %v1389 = vpop.f32.mrb[0].mxu0
      %1390 = vmatprep.mubr.f32.mxu0 0.0
      %1391 = vmatmul.mubr.f32.gmra.mrb[0].mxu0 %v1230
      %v1392 = vpop.f32.mrb[0].mxu0
      %v1393 = vadd.f32 0.0, %v1392
      %v1394 = vpop.f32.mrb[0].mxu0
      %1395 = vmatprep.mubr.f32.mxu0 0.0
      %1396 = vmatmul.mubr.f32.gmra.mrb[0].mxu0 %v1233
      %v1397 = vpop.f32.mrb[0].mxu0
      %v1398 = vadd.f32 0.0, %v1397
      %v1399 = vpop.f32.mrb[0].mxu0
      %1400 = vmatprep.mubr.f32.mxu0 0.0
      %1401 = vmatmul.mubr.f32.gmra.mrb[0].mxu0 %v1236
      %v1402 = vpop.f32.mrb[0].mxu0
      %v1403 = vadd.f32 0.0, %v1402
      %v1404 = vpop.f32.mrb[0].mxu0
      %1405 = vmatprep.mubr.f32.mxu0 0.0
      %1406 = vmatmul.mubr.f32.gmra.mrb[0].mxu0 %v1239
      %v1407 = vpop.f32.mrb[0].mxu0
      %v1408 = vadd.f32 0.0, %v1407
      %v1409 = vpop.f32.mrb[0].mxu0
      %1410 = vmatprep.mubr.f32.mxu0 0.0
      %1411 = vmatmul.mubr.f32.gmra.mrb[0].mxu0 %v1242
      %v1412 = vpop.f32.mrb[0].mxu0
      %v1413 = vadd.f32 0.0, %v1412
      %v1414 = vpop.f32.mrb[0].mxu0
      %1415 = vmatprep.mubr.f32.mxu0 0.0
      %1416 = vmatmul.mubr.f32.gmra.mrb[0].mxu0 %v1245
      %v1417 = vpop.f32.mrb[0].mxu0
      %v1418 = vadd.f32 0.0, %v1417
      %v1419 = vpop.f32.mrb[0].mxu0
      %1420 = vmatprep.mubr.f32.mxu0 0.0
      %1421 = vmatmul.mubr.f32.gmra.mrb[0].mxu0 %v1248
      %v1422 = vpop.f32.mrb[0].mxu0
      %v1423 = vadd.f32 0.0, %v1422
      %v1424 = vpop.f32.mrb[0].mxu0
      %1425 = vmatprep.mubr.f32.mxu0 0.0
      %1426 = vmatmul.mubr.f32.gmra.mrb[0].mxu0 %v1251
      %v1427 = vpop.f32.mrb[0].mxu0
      %v1428 = vadd.f32 0.0, %v1427
      %v1429 = vpop.f32.mrb[0].mxu0
      %1430 = vmatprep.mubr.f32.mxu0 0.0
      %1431 = vmatmul.mubr.f32.gmra.mrb[0].mxu0 %v1254
      %v1432 = vpop.f32.mrb[0].mxu0
      %v1433 = vadd.f32 0.0, %v1432
      %v1434 = vpop.f32.mrb[0].mxu0
      %1435 = vmatprep.mubr.f32.mxu0 0.0
      %1436 = vmatmul.mubr.f32.gmra.mrb[0].mxu0 %v1257
      %v1437 = vpop.f32.mrb[0].mxu0
      %v1438 = vadd.f32 0.0, %v1437
      %v1439 = vpop.f32.mrb[0].mxu0
      %1440 = vmatprep.mubr.f32.mxu0 0.0
      %1441 = vmatmul.mubr.f32.gmra.mrb[0].mxu0 %v1260
      %v1442 = vpop.f32.mrb[0].mxu0
      %v1443 = vadd.f32 0.0, %v1442
      %v1444 = vpop.f32.mrb[0].mxu0
      %1445 = vmatprep.mubr.f32.mxu0 0.0
      %1446 = vmatmul.mubr.f32.gmra.mrb[0].mxu0 %v1263
      %v1447 = vpop.f32.mrb[0].mxu0
      %v1448 = vadd.f32 0.0, %v1447
      %v1449 = vpop.f32.mrb[0].mxu0
      %1450 = vmatprep.mubr.f32.mxu0 0.0
      %1451 = vmatmul.mubr.f32.gmra.mrb[0].mxu0 %v1266
      %v1452 = vpop.f32.mrb[0].mxu0
      %v1453 = vadd.f32 0.0, %v1452
      %v1454 = vpop.f32.mrb[0].mxu0
      %1455 = vmatprep.mubr.f32.mxu0 0.0
      %1456 = vmatmul.mubr.f32.gmra.mrb[0].mxu0 %v1269
      %v1457 = vpop.f32.mrb[0].mxu0
      %v1458 = vadd.f32 0.0, %v1457
      %v1459 = vpop.f32.mrb[0].mxu0
      %1460 = vmatprep.mubr.f32.mxu0 0.0
      %1461 = vmatmul.mubr.f32.gmra.mrb[0].mxu0 %v1272
      %v1462 = vpop.f32.mrb[0].mxu0
      %v1463 = vadd.f32 0.0, %v1462
      %v1464 = vpop.f32.mrb[0].mxu0
      %1465 = vmatprep.mubr.f32.mxu0 0.0
      %1466 = vmatmul.mubr.f32.gmra.mrb[0].mxu0 %v1275
      %v1467 = vpop.f32.mrb[0].mxu0
      %v1468 = vadd.f32 0.0, %v1467
      %v1469 = vpop.f32.mrb[0].mxu0
      %1470 = vmatprep.mubr.f32.mxu0 0.0
      %1471 = vmatmul.mubr.f32.gmra.mrb[0].mxu0 %v1278
      %v1472 = vpop.f32.mrb[0].mxu0
      %v1473 = vadd.f32 0.0, %v1472
      %v1474 = vpop.f32.mrb[0].mxu0
      %1475 = vmatprep.mubr.f32.mxu0 0.0
      %1476 = vmatmul.mubr.f32.gmra.mrb[0].mxu0 %v1281
      %v1477 = vpop.f32.mrb[0].mxu0
      %v1478 = vadd.f32 0.0, %v1477
      %v1479 = vpop.f32.mrb[0].mxu0
      %1480 = vmatprep.mubr.f32.mxu0 0.0
      %1481 = vmatmul.mubr.f32.gmra.mrb[0].mxu0 %v1284
      %v1482 = vpop.f32.mrb[0].mxu0
      %v1483 = vadd.f32 0.0, %v1482
      %v1484 = vpop.f32.mrb[0].mxu0
      %1485 = vmatprep.mubr.f32.mxu0 0.0
      %1486 = vmatmul.mubr.f32.gmra.mrb[0].mxu0 %v1287
      %v1487 = vpop.f32.mrb[0].mxu0
      %v1488 = vadd.f32 0.0, %v1487
      %v1489 = vpop.f32.mrb[0].mxu0
      %1490 = vmatprep.mubr.f32.mxu0 0.0
      %1491 = vmatmul.mubr.f32.gmra.mrb[0].mxu0 %v1290
      %v1492 = vpop.f32.mrb[0].mxu0
      %v1493 = vadd.f32 0.0, %v1492
      %v1494 = vpop.f32.mrb[0].mxu0
      %1495 = vmatprep.mubr.f32.mxu0 0.0
      %1496 = vmatmul.mubr.f32.gmra.mrb[0].mxu0 %v1293
      %v1497 = vpop.f32.mrb[0].mxu0
      %v1498 = vadd.f32 0.0, %v1497
      %v1499 = vpop.f32.mrb[0].mxu0
      %1500 = vmatprep.mubr.f32.mxu0 0.0
      %1501 = vmatmul.mubr.f32.gmra.mrb[0].mxu0 %v1296
      %v1502 = vpop.f32.mrb[0].mxu0
      %v1503 = vadd.f32 0.0, %v1502
      %v1504 = vpop.f32.mrb[0].mxu0
      %1505 = vmatprep.mubr.f32.mxu0 0.0
      %1506 = vmatmul.mubr.f32.gmra.mrb[0].mxu0 %v1299
      %v1507 = vpop.f32.mrb[0].mxu0
      %v1508 = vadd.f32 0.0, %v1507
      %v1509 = vpop.f32.mrb[0].mxu0
      %1510 = vmatprep.mubr.f32.mxu0 0.0
      %1511 = vmatmul.mubr.f32.gmra.mrb[0].mxu0 %v1302
      %v1512 = vpop.f32.mrb[0].mxu0
      %v1513 = vadd.f32 0.0, %v1512
      %v1514 = vpop.f32.mrb[0].mxu0
      %1515 = vmatprep.mubr.f32.mxu0 0.0
      %1516 = vmatmul.mubr.f32.gmra.mrb[0].mxu0 %v1305
      %v1517 = vpop.f32.mrb[0].mxu0
      %v1518 = vadd.f32 0.0, %v1517
      %v1519 = vpop.f32.mrb[0].mxu0
      %1520 = vmatprep.mubr.f32.mxu0 0.0
      %1521 = vmatmul.mubr.f32.gmra.mrb[0].mxu0 %v1308
      %v1522 = vpop.f32.mrb[0].mxu0
      %v1523 = vadd.f32 0.0, %v1522
      %v1524 = vpop.f32.mrb[0].mxu0
      %1525 = vmatprep.mubr.f32.mxu0 0.0
      %1526 = vmatmul.mubr.f32.gmra.mrb[0].mxu0 %v1311
      %v1527 = vpop.f32.mrb[0].mxu0
      %v1528 = vadd.f32 0.0, %v1527
      %v1529 = vpop.f32.mrb[0].mxu0
      %1530 = vdwg.mxu0
      %v1531 = vadd.f32 %v1012, %v1383
      %v1532 = vadd.f32 %v1017, %v1388
      %v1533 = vadd.f32 %v1022, %v1393
      %v1534 = vadd.f32 %v1027, %v1398
      %v1535 = vadd.f32 %v1032, %v1403
      %v1536 = vadd.f32 %v1037, %v1408
      %v1537 = vadd.f32 %v1042, %v1413
      %v1538 = vadd.f32 %v1047, %v1418
      %v1539 = vadd.f32 %v1052, %v1423
      %v1540 = vadd.f32 %v1057, %v1428
      %v1541 = vadd.f32 %v1062, %v1433
      %v1542 = vadd.f32 %v1067, %v1438
      %v1543 = vadd.f32 %v1072, %v1443
      %v1544 = vadd.f32 %v1077, %v1448
      %v1545 = vadd.f32 %v1082, %v1453
      %v1546 = vadd.f32 %v1087, %v1458
      %v1547 = vadd.f32 %v1092, %v1463
      %v1548 = vadd.f32 %v1097, %v1468
      %v1549 = vadd.f32 %v1102, %v1473
      %v1550 = vadd.f32 %v1107, %v1478
      %v1551 = vadd.f32 %v1112, %v1483
      %v1552 = vadd.f32 %v1117, %v1488
      %v1553 = vadd.f32 %v1122, %v1493
      %v1554 = vadd.f32 %v1127, %v1498
      %v1555 = vadd.f32 %v1132, %v1503
      %v1556 = vadd.f32 %v1137, %v1508
      %v1557 = vadd.f32 %v1142, %v1513
      %v1558 = vadd.f32 %v1147, %v1518
      %v1559 = vadd.f32 %v1152, %v1523
      %v1560 = vadd.f32 %v1157, %v1528
      %v1561 = vld [vmem:[%s4] sm:$0x1]
      %v1563 = vlaneseq
      %v1564 = vshrl.u32 %v1563, 7
      %v1565 = vsub.s32 0, %v1564
      %v1566 = vrot.slane %v1561, %v1565
      %v1568 = vadd.f32 %v1531, %v1566
      %v1569 = vadd.f32 %v1532, %v1566
      %v1570 = vadd.f32 %v1533, %v1566
      %v1571 = vadd.f32 %v1534, %v1566
      %v1572 = vadd.f32 %v1535, %v1566
      %v1573 = vadd.f32 %v1536, %v1566
      %v1574 = vadd.f32 %v1537, %v1566
      %v1575 = vadd.f32 %v1538, %v1566
      %v1576 = vadd.f32 %v1539, %v1566
      %v1577 = vadd.f32 %v1540, %v1566
      %v1578 = vadd.f32 %v1541, %v1566
      %v1579 = vadd.f32 %v1542, %v1566
      %v1580 = vadd.f32 %v1543, %v1566
      %v1581 = vadd.f32 %v1544, %v1566
      %v1582 = vadd.f32 %v1545, %v1566
      %v1583 = vadd.f32 %v1546, %v1566
      %v1584 = vadd.f32 %v1547, %v1566
      %v1585 = vadd.f32 %v1548, %v1566
      %v1586 = vadd.f32 %v1549, %v1566
      %v1587 = vadd.f32 %v1550, %v1566
      %v1588 = vadd.f32 %v1551, %v1566
      %v1589 = vadd.f32 %v1552, %v1566
      %v1590 = vadd.f32 %v1553, %v1566
      %v1591 = vadd.f32 %v1554, %v1566
      %v1592 = vadd.f32 %v1555, %v1566
      %v1593 = vadd.f32 %v1556, %v1566
      %v1594 = vadd.f32 %v1557, %v1566
      %v1595 = vadd.f32 %v1558, %v1566
      %v1596 = vadd.f32 %v1559, %v1566
      %v1597 = vadd.f32 %v1560, %v1566
      %v1598 = vsub.f32 0.0, %v1568
      %v1599 = vsub.f32 0.0, %v1569
      %v1600 = vsub.f32 0.0, %v1570
      %v1601 = vsub.f32 0.0, %v1571
      %v1602 = vsub.f32 0.0, %v1572
      %v1603 = vsub.f32 0.0, %v1573
      %v1604 = vsub.f32 0.0, %v1574
      %v1605 = vsub.f32 0.0, %v1575
      %v1606 = vsub.f32 0.0, %v1576
      %v1607 = vsub.f32 0.0, %v1577
      %v1608 = vsub.f32 0.0, %v1578
      %v1609 = vsub.f32 0.0, %v1579
      %v1610 = vsub.f32 0.0, %v1580
      %v1611 = vsub.f32 0.0, %v1581
      %v1612 = vsub.f32 0.0, %v1582
      %v1613 = vsub.f32 0.0, %v1583
      %v1614 = vsub.f32 0.0, %v1584
      %v1615 = vsub.f32 0.0, %v1585
      %v1616 = vsub.f32 0.0, %v1586
      %v1617 = vsub.f32 0.0, %v1587
      %v1618 = vsub.f32 0.0, %v1588
      %v1619 = vsub.f32 0.0, %v1589
      %v1620 = vsub.f32 0.0, %v1590
      %v1621 = vsub.f32 0.0, %v1591
      %v1622 = vsub.f32 0.0, %v1592
      %v1623 = vsub.f32 0.0, %v1593
      %v1624 = vsub.f32 0.0, %v1594
      %v1625 = vsub.f32 0.0, %v1595
      %v1626 = vsub.f32 0.0, %v1596
      %v1627 = vsub.f32 0.0, %v1597
      %v1628 = vmul.f32 %v1598, 1.442695
      %v1629 = vpow.pop %v1628
      %v1630 = vmul.f32 %v1599, 1.442695
      %v1631 = vpow.pop %v1630
      %v1632 = vmul.f32 %v1600, 1.442695
      %v1633 = vpow.pop %v1632
      %v1634 = vmul.f32 %v1601, 1.442695
      %v1635 = vpow.pop %v1634
      %v1636 = vmul.f32 %v1602, 1.442695
      %v1637 = vpow.pop %v1636
      %v1638 = vmul.f32 %v1603, 1.442695
      %v1639 = vpow.pop %v1638
      %v1640 = vmul.f32 %v1604, 1.442695
      %v1641 = vpow.pop %v1640
      %v1642 = vmul.f32 %v1605, 1.442695
      %v1643 = vpow.pop %v1642
      %v1644 = vmul.f32 %v1606, 1.442695
      %v1645 = vpow.pop %v1644
      %v1646 = vmul.f32 %v1607, 1.442695
      %v1647 = vpow.pop %v1646
      %v1648 = vmul.f32 %v1608, 1.442695
      %v1649 = vpow.pop %v1648
      %v1650 = vmul.f32 %v1609, 1.442695
      %v1651 = vpow.pop %v1650
      %v1652 = vmul.f32 %v1610, 1.442695
      %v1653 = vpow.pop %v1652
      %v1654 = vmul.f32 %v1611, 1.442695
      %v1655 = vpow.pop %v1654
      %v1656 = vmul.f32 %v1612, 1.442695
      %v1657 = vpow.pop %v1656
      %v1658 = vmul.f32 %v1613, 1.442695
      %v1659 = vpow.pop %v1658
      %v1660 = vmul.f32 %v1614, 1.442695
      %v1661 = vpow.pop %v1660
      %v1662 = vmul.f32 %v1615, 1.442695
      %v1663 = vpow.pop %v1662
      %v1664 = vmul.f32 %v1616, 1.442695
      %v1665 = vpow.pop %v1664
      %v1666 = vmul.f32 %v1617, 1.442695
      %v1667 = vpow.pop %v1666
      %v1668 = vmul.f32 %v1618, 1.442695
      %v1669 = vpow.pop %v1668
      %v1670 = vmul.f32 %v1619, 1.442695
      %v1671 = vpow.pop %v1670
      %v1672 = vmul.f32 %v1620, 1.442695
      %v1673 = vpow.pop %v1672
      %v1674 = vmul.f32 %v1621, 1.442695
      %v1675 = vpow.pop %v1674
      %v1676 = vmul.f32 %v1622, 1.442695
      %v1677 = vpow.pop %v1676
      %v1678 = vmul.f32 %v1623, 1.442695
      %v1679 = vpow.pop %v1678
      %v1680 = vmul.f32 %v1624, 1.442695
      %v1681 = vpow.pop %v1680
      %v1682 = vmul.f32 %v1625, 1.442695
      %v1683 = vpow.pop %v1682
      %v1684 = vmul.f32 %v1626, 1.442695
      %v1685 = vpow.pop %v1684
      %v1686 = vmul.f32 %v1627, 1.442695
      %v1687 = vpow.pop %v1686
      %v1688 = vadd.f32 %v1629, 1.0
      %v1689 = vadd.f32 %v1631, 1.0
      %v1690 = vadd.f32 %v1633, 1.0
      %v1691 = vadd.f32 %v1635, 1.0
      %v1692 = vadd.f32 %v1637, 1.0
      %v1693 = vadd.f32 %v1639, 1.0
      %v1694 = vadd.f32 %v1641, 1.0
      %v1695 = vadd.f32 %v1643, 1.0
      %v1696 = vadd.f32 %v1645, 1.0
      %v1697 = vadd.f32 %v1647, 1.0
      %v1698 = vadd.f32 %v1649, 1.0
      %v1699 = vadd.f32 %v1651, 1.0
      %v1700 = vadd.f32 %v1653, 1.0
      %v1701 = vadd.f32 %v1655, 1.0
      %v1702 = vadd.f32 %v1657, 1.0
      %v1703 = vadd.f32 %v1659, 1.0
      %v1704 = vadd.f32 %v1661, 1.0
      %v1705 = vadd.f32 %v1663, 1.0
      %v1706 = vadd.f32 %v1665, 1.0
      %v1707 = vadd.f32 %v1667, 1.0
      %v1708 = vadd.f32 %v1669, 1.0
      %v1709 = vadd.f32 %v1671, 1.0
      %v1710 = vadd.f32 %v1673, 1.0
      %v1711 = vadd.f32 %v1675, 1.0
      %v1712 = vadd.f32 %v1677, 1.0
      %v1713 = vadd.f32 %v1679, 1.0
      %v1714 = vadd.f32 %v1681, 1.0
      %v1715 = vadd.f32 %v1683, 1.0
      %v1716 = vadd.f32 %v1685, 1.0
      %v1717 = vadd.f32 %v1687, 1.0
      %v1718 = vrcp.pop %v1688
      %v1719 = vrcp.pop %v1689
      %v1720 = vrcp.pop %v1690
      %v1721 = vrcp.pop %v1691
      %v1722 = vrcp.pop %v1692
      %v1723 = vrcp.pop %v1693
      %v1724 = vrcp.pop %v1694
      %v1725 = vrcp.pop %v1695
      %v1726 = vrcp.pop %v1696
      %v1727 = vrcp.pop %v1697
      %v1728 = vrcp.pop %v1698
      %v1729 = vrcp.pop %v1699
      %v1730 = vrcp.pop %v1700
      %v1731 = vrcp.pop %v1701
      %v1732 = vrcp.pop %v1702
      %v1733 = vrcp.pop %v1703
      %v1734 = vrcp.pop %v1704
      %v1735 = vrcp.pop %v1705
      %v1736 = vrcp.pop %v1706
      %v1737 = vrcp.pop %v1707
      %v1738 = vrcp.pop %v1708
      %v1739 = vrcp.pop %v1709
      %v1740 = vrcp.pop %v1710
      %v1741 = vrcp.pop %v1711
      %v1742 = vrcp.pop %v1712
      %v1743 = vrcp.pop %v1713
      %v1744 = vrcp.pop %v1714
      %v1745 = vrcp.pop %v1715
      %v1746 = vrcp.pop %v1716
      %v1747 = vrcp.pop %v1717
      %v1748 = vmul.f32 %v1568, %v1718
      %v1749 = vmul.f32 %v1569, %v1719
      %v1750 = vmul.f32 %v1570, %v1720
      %v1751 = vmul.f32 %v1571, %v1721
      %v1752 = vmul.f32 %v1572, %v1722
      %v1753 = vmul.f32 %v1573, %v1723
      %v1754 = vmul.f32 %v1574, %v1724
      %v1755 = vmul.f32 %v1575, %v1725
      %v1756 = vmul.f32 %v1576, %v1726
      %v1757 = vmul.f32 %v1577, %v1727
      %v1758 = vmul.f32 %v1578, %v1728
      %v1759 = vmul.f32 %v1579, %v1729
      %v1760 = vmul.f32 %v1580, %v1730
      %v1761 = vmul.f32 %v1581, %v1731
      %v1762 = vmul.f32 %v1582, %v1732
      %v1763 = vmul.f32 %v1583, %v1733
      %v1764 = vmul.f32 %v1584, %v1734
      %v1765 = vmul.f32 %v1585, %v1735
      %v1766 = vmul.f32 %v1586, %v1736
      %v1767 = vmul.f32 %v1587, %v1737
      %v1768 = vmul.f32 %v1588, %v1738
      %v1769 = vmul.f32 %v1589, %v1739
      %v1770 = vmul.f32 %v1590, %v1740
      %v1771 = vmul.f32 %v1591, %v1741
      %v1772 = vmul.f32 %v1592, %v1742
      %v1773 = vmul.f32 %v1593, %v1743
      %v1774 = vmul.f32 %v1594, %v1744
      %v1775 = vmul.f32 %v1595, %v1745
      %v1776 = vmul.f32 %v1596, %v1746
      %v1777 = vmul.f32 %v1597, %v1747
      %1778 = vst.msk [vmem:[#allocation3] sm:$0xff] %vm413, %v1748
      %1779 = vst.msk [vmem:[#allocation3 + $0x8] sm:$0xff] %vm413, %v1749
      %1780 = vst.msk [vmem:[#allocation3 + $0x10] sm:$0xff] %vm413, %v1750
      %1781 = vst.msk [vmem:[#allocation3 + $0x18] sm:$0xff] %vm413, %v1751
      %1782 = vst.msk [vmem:[#allocation3 + $0x20] sm:$0xff] %vm413, %v1752
      %1783 = vst.msk [vmem:[#allocation3 + $0x28] sm:$0xff] %vm413, %v1753
      %1784 = vst.msk [vmem:[#allocation3 + $0x30] sm:$0xff] %vm413, %v1754
      %1785 = vst.msk [vmem:[#allocation3 + $0x38] sm:$0xff] %vm413, %v1755
      %1786 = vst.msk [vmem:[#allocation3 + $0x40] sm:$0xff] %vm413, %v1756
      %1787 = vst.msk [vmem:[#allocation3 + $0x48] sm:$0xff] %vm413, %v1757
      %1788 = vst.msk [vmem:[#allocation3 + $0x50] sm:$0xff] %vm413, %v1758
      %1789 = vst.msk [vmem:[#allocation3 + $0x58] sm:$0xff] %vm413, %v1759
      %1790 = vst.msk [vmem:[#allocation3 + $0x60] sm:$0xff] %vm413, %v1760
      %1791 = vst.msk [vmem:[#allocation3 + $0x68] sm:$0xff] %vm413, %v1761
      %1792 = vst.msk [vmem:[#allocation3 + $0x70] sm:$0xff] %vm413, %v1762
      %1793 = vst.msk [vmem:[#allocation3 + $0x78] sm:$0xff] %vm413, %v1763
      %1794 = vst.msk [vmem:[#allocation3 + $0x80] sm:$0xff] %vm413, %v1764
      %1795 = vst.msk [vmem:[#allocation3 + $0x88] sm:$0xff] %vm413, %v1765
      %1796 = vst.msk [vmem:[#allocation3 + $0x90] sm:$0xff] %vm413, %v1766
      %1797 = vst.msk [vmem:[#allocation3 + $0x98] sm:$0xff] %vm413, %v1767
      %1798 = vst.msk [vmem:[#allocation3 + $0xa0] sm:$0xff] %vm413, %v1768
      %1799 = vst.msk [vmem:[#allocation3 + $0xa8] sm:$0xff] %vm413, %v1769
      %1800 = vst.msk [vmem:[#allocation3 + $0xb0] sm:$0xff] %vm413, %v1770
      %1801 = vst.msk [vmem:[#allocation3 + $0xb8] sm:$0xff] %vm413, %v1771
      %1802 = vst.msk [vmem:[#allocation3 + $0xc0] sm:$0xff] %vm413, %v1772
      %1803 = vst.msk [vmem:[#allocation3 + $0xc8] sm:$0xff] %vm413, %v1773
      %1804 = vst.msk [vmem:[#allocation3 + $0xd0] sm:$0xff] %vm413, %v1774
      %1805 = vst.msk [vmem:[#allocation3 + $0xd8] sm:$0xff] %vm413, %v1775
      %1806 = vst.msk [vmem:[#allocation3 + $0xe0] sm:$0xff] %vm413, %v1776
      %1807 = vst.msk [vmem:[#allocation3 + $0xe8] sm:$0xff] %vm413, %v1777
      %p1808 = scmp.eq.s32.totalorder %s23, 0
      // Predicated region
      $region49: #{tpu_custom_call.1} parent=47 // pred_check
        %p1809 = pneg %p1808
      $region50: #{tpu_custom_call.1} parent=47 // pred_check_branch
        %1811 = sbr.rel (%p1809) target = $region52
      $region51: #{tpu_custom_call.1} parent=47 // pred_region
        %1812 = vst.msk [vmem:[#allocation3] sm:$0xff] %vm413, 0.0
        %1813 = vst.msk [vmem:[#allocation3 + $0x8] sm:$0xff] %vm413, 0.0
        %1814 = vst.msk [vmem:[#allocation3 + $0x10] sm:$0xff] %vm413, 0.0
      $region52: #{tpu_custom_call.1} parent=47 // pred_fallthru
        _
      %p1815 = scmp.eq.s32.totalorder %s23, 1
      // Predicated region
      $region53: #{tpu_custom_call.1} parent=47 // pred_check
        %p1816 = pneg %p1815
      $region54: #{tpu_custom_call.1} parent=47 // pred_check_branch
        %1818 = sbr.rel (%p1816) target = $region56
      $region55: #{tpu_custom_call.1} parent=47 // pred_region
        %1819 = vst.msk [vmem:[#allocation3 + $0xd8] sm:$0xff] %vm413, 0.0
        %1820 = vst.msk [vmem:[#allocation3 + $0xe0] sm:$0xff] %vm413, 0.0
        %1821 = vst.msk [vmem:[#allocation3 + $0xe8] sm:$0xff] %vm413, 0.0
      $region56: #{tpu_custom_call.1} parent=47 // pred_fallthru
        _
      %v1822 = vld [vmem:[#allocation3] sm:$0xff]
      %v1823 = vld [vmem:[#allocation3 + $0x8] sm:$0xff]
      %v1824 = vld [vmem:[#allocation3 + $0x10] sm:$0xff]
      %v1825 = vld [vmem:[#allocation3 + $0x18] sm:$0xff]
      %v1826 = vld [vmem:[#allocation3 + $0x20] sm:$0xff]
      %v1827 = vld [vmem:[#allocation3 + $0x28] sm:$0xff]
      %v1828 = vld [vmem:[#allocation3 + $0x30] sm:$0xff]
      %v1829 = vld [vmem:[#allocation3 + $0x38] sm:$0xff]
      %v1830 = vld [vmem:[#allocation3 + $0x40] sm:$0xff]
      %v1831 = vld [vmem:[#allocation3 + $0x48] sm:$0xff]
      %v1832 = vld [vmem:[#allocation3 + $0x50] sm:$0xff]
      %v1833 = vld [vmem:[#allocation3 + $0x58] sm:$0xff]
      %v1834 = vld [vmem:[#allocation3 + $0x60] sm:$0xff]
      %v1835 = vld [vmem:[#allocation3 + $0x68] sm:$0xff]
      %v1836 = vld [vmem:[#allocation3 + $0x70] sm:$0xff]
      %v1837 = vld [vmem:[#allocation3 + $0x78] sm:$0xff]
      %v1838 = vld [vmem:[#allocation3 + $0x80] sm:$0xff]
      %v1839 = vld [vmem:[#allocation3 + $0x88] sm:$0xff]
      %v1840 = vld [vmem:[#allocation3 + $0x90] sm:$0xff]
      %v1841 = vld [vmem:[#allocation3 + $0x98] sm:$0xff]
      %v1842 = vld [vmem:[#allocation3 + $0xa0] sm:$0xff]
      %v1843 = vld [vmem:[#allocation3 + $0xa8] sm:$0xff]
      %v1844 = vld [vmem:[#allocation3 + $0xb0] sm:$0xff]
      %v1845 = vld [vmem:[#allocation3 + $0xb8] sm:$0xff]
      %v1846 = vld [vmem:[%s5] sm:$0xf]
      %v1847 = vld [vmem:[#allocation3 + $0xc0] sm:$0xff]
      %v1848 = vld [vmem:[#allocation3 + $0xc8] sm:$0xff]
      %v1849 = vld [vmem:[#allocation3 + $0xd0] sm:$0xff]
      %s1850 = scalar_lea.vmem %s5, 4
      %v1851 = vld [vmem:[%s1850] sm:$0xf]
      %v1853 = vsel %vm413, %v1825, 0
      %v1856 = vsel %vm413, %v1826, 0
      %v1859 = vsel %vm413, %v1827, 0
      %v1862 = vsel %vm413, %v1828, 0
      %v1865 = vsel %vm413, %v1829, 0
      %v1868 = vsel %vm413, %v1830, 0
      %v1871 = vsel %vm413, %v1831, 0
      %v1874 = vsel %vm413, %v1832, 0
      %v1877 = vsel %vm413, %v1833, 0
      %v1880 = vsel %vm413, %v1834, 0
      %v1883 = vsel %vm413, %v1835, 0
      %v1886 = vsel %vm413, %v1836, 0
      %v1889 = vsel %vm413, %v1837, 0
      %v1892 = vsel %vm413, %v1838, 0
      %v1895 = vsel %vm413, %v1839, 0
      %v1898 = vsel %vm413, %v1840, 0
      %v1901 = vsel %vm413, %v1841, 0
      %v1904 = vsel %vm413, %v1842, 0
      %v1907 = vsel %vm413, %v1843, 0
      %v1910 = vsel %vm413, %v1844, 0
      %v1913 = vsel %vm413, %v1845, 0
      %v1916 = vsel %vm413, %v1847, 0
      %v1919 = vsel %vm413, %v1848, 0
      %v1922 = vsel %vm413, %v1849, 0
      %v1925 = vsel %vm633, %v1851, 0
      %1927 = vmatprep.subr.mxu0 0.0
      %1928 = vmatpush1.msra.mxu0 %v1925
      %1929 = vmatprep.subr.mxu0 0.0
      %1930 = vmatpush1.msra.mxu0 0.0
      %1931 = vmatprep.subr.mxu0 0.0
      %1932 = vmatpush1.msra.mxu0 0.0
      %1933 = vmatprep.subr.mxu0 0.0
      %1934 = vmatpush1.msra.mxu0 0.0
      %1935 = vmatprep.subr.mxu0 0.0
      %1936 = vmatpush1.msra.mxu0 0.0
      %1937 = vmatprep.subr.mxu0 0.0
      %1938 = vmatpush1.msra.mxu0 0.0
      %1939 = vmatprep.subr.mxu0 0.0
      %1940 = vmatpush1.msra.mxu0 0.0
      %1941 = vmatprep.subr.mxu0 0.0
      %1942 = vmatpush1.msra.mxu0 0.0
      %1943 = vmatprep.subr.mxu0 0.0
      %1944 = vmatpush1.msra.mxu0 0.0
      %1945 = vmatprep.subr.mxu0 0.0
      %1946 = vmatpush1.msra.mxu0 0.0
      %1947 = vmatprep.subr.mxu0 0.0
      %1948 = vmatpush1.msra.mxu0 0.0
      %1949 = vmatprep.subr.mxu0 0.0
      %1950 = vmatpush1.msra.mxu0 0.0
      %1951 = vmatprep.subr.mxu0 0.0
      %1952 = vmatpush1.msra.mxu0 0.0
      %1953 = vmatprep.subr.mxu0 0.0
      %1954 = vmatpush1.msra.mxu0 0.0
      %1955 = vmatprep.subr.mxu0 0.0
      %1956 = vmatpush1.msra.mxu0 0.0
      %1957 = vmatprep.subr.mxu0 0.0
      %1958 = vmatpush1.msra.mxu0 0.0
      %1959 = vmatprep.subr.mxu0 0.0
      %1960 = vmatpush1.msra.mxu0 0.0
      %1961 = vmatprep.subr.mxu0 0.0
      %1962 = vmatpush1.msra.mxu0 0.0
      %1963 = vmatprep.subr.mxu0 0.0
      %1964 = vmatpush1.msra.mxu0 0.0
      %1965 = vmatprep.subr.mxu0 0.0
      %1966 = vmatpush1.msra.mxu0 0.0
      %1967 = vmatprep.subr.mxu0 0.0
      %1968 = vmatpush1.msra.mxu0 0.0
      %1969 = vmatprep.subr.mxu0 0.0
      %1970 = vmatpush1.msra.mxu0 0.0
      %1971 = vmatprep.subr.mxu0 0.0
      %1972 = vmatpush1.msra.mxu0 0.0
      %1973 = vmatprep.subr.mxu0 0.0
      %1974 = vmatpush1.msra.mxu0 0.0
      %1975 = vmatprep.subr.mxu0 0.0
      %1976 = vmatpush1.msra.mxu0 0.0
      %1977 = vmatprep.subr.mxu0 0.0
      %1978 = vmatpush1.msra.mxu0 0.0
      %1979 = vmatprep.subr.mxu0 0.0
      %1980 = vmatpush1.msra.mxu0 0.0
      %1981 = vmatprep.subr.mxu0 0.0
      %1982 = vmatpush1.msra.mxu0 0.0
      %1983 = vmatprep.subr.mxu0 0.0
      %1984 = vmatpush1.msra.mxu0 0.0
      %1985 = vmatprep.subr.mxu0 0.0
      %1986 = vmatpush1.msra.mxu0 0.0
      %1987 = vmatprep.subr.mxu0 0.0
      %1988 = vmatpush1.msra.mxu0 0.0
      %1989 = vmatprep.subr.mxu0 0.0
      %1990 = vmatpush1.msra.mxu0 0.0
      %1991 = vmatprep.mubr.f32.mxu0 0.0
      %1992 = vmatmul.mubr.f32.gmra.mrb[0].mxu0 %v1853
      %v1993 = vpop.f32.mrb[0].mxu0
      %v1994 = vadd.f32 0.0, %v1993
      %v1995 = vpop.f32.mrb[0].mxu0
      %1996 = vmatprep.mubr.f32.mxu0 0.0
      %1997 = vmatmul.mubr.f32.gmra.mrb[0].mxu0 %v1856
      %v1998 = vpop.f32.mrb[0].mxu0
      %v1999 = vadd.f32 0.0, %v1998
      %v2000 = vpop.f32.mrb[0].mxu0
      %2001 = vmatprep.mubr.f32.mxu0 0.0
      %2002 = vmatmul.mubr.f32.gmra.mrb[0].mxu0 %v1859
      %v2003 = vpop.f32.mrb[0].mxu0
      %v2004 = vpop.f32.mrb[0].mxu0
      %2005 = vmatprep.mubr.f32.mxu0 0.0
      %2006 = vmatmul.mubr.f32.gmra.mrb[0].mxu0 %v1862
      %v2007 = vpop.f32.mrb[0].mxu0
      %v2008 = vadd.f32 0.0, %v2007
      %v2009 = vpop.f32.mrb[0].mxu0
      %2010 = vmatprep.mubr.f32.mxu0 0.0
      %2011 = vmatmul.mubr.f32.gmra.mrb[0].mxu0 %v1865
      %v2012 = vpop.f32.mrb[0].mxu0
      %v2013 = vadd.f32 0.0, %v2012
      %v2014 = vpop.f32.mrb[0].mxu0
      %2015 = vmatprep.mubr.f32.mxu0 0.0
      %2016 = vmatmul.mubr.f32.gmra.mrb[0].mxu0 %v1868
      %v2017 = vpop.f32.mrb[0].mxu0
      %v2018 = vpop.f32.mrb[0].mxu0
      %2019 = vmatprep.mubr.f32.mxu0 0.0
      %2020 = vmatmul.mubr.f32.gmra.mrb[0].mxu0 %v1871
      %v2021 = vpop.f32.mrb[0].mxu0
      %v2022 = vadd.f32 0.0, %v2021
      %v2023 = vpop.f32.mrb[0].mxu0
      %2024 = vmatprep.mubr.f32.mxu0 0.0
      %2025 = vmatmul.mubr.f32.gmra.mrb[0].mxu0 %v1874
      %v2026 = vpop.f32.mrb[0].mxu0
      %v2027 = vadd.f32 0.0, %v2026
      %v2028 = vpop.f32.mrb[0].mxu0
      %2029 = vmatprep.mubr.f32.mxu0 0.0
      %2030 = vmatmul.mubr.f32.gmra.mrb[0].mxu0 %v1877
      %v2031 = vpop.f32.mrb[0].mxu0
      %v2032 = vpop.f32.mrb[0].mxu0
      %2033 = vmatprep.mubr.f32.mxu0 0.0
      %2034 = vmatmul.mubr.f32.gmra.mrb[0].mxu0 %v1880
      %v2035 = vpop.f32.mrb[0].mxu0
      %v2036 = vadd.f32 0.0, %v2035
      %v2037 = vpop.f32.mrb[0].mxu0
      %2038 = vmatprep.mubr.f32.mxu0 0.0
      %2039 = vmatmul.mubr.f32.gmra.mrb[0].mxu0 %v1883
      %v2040 = vpop.f32.mrb[0].mxu0
      %v2041 = vadd.f32 0.0, %v2040
      %v2042 = vpop.f32.mrb[0].mxu0
      %2043 = vmatprep.mubr.f32.mxu0 0.0
      %2044 = vmatmul.mubr.f32.gmra.mrb[0].mxu0 %v1886
      %v2045 = vpop.f32.mrb[0].mxu0
      %v2046 = vpop.f32.mrb[0].mxu0
      %2047 = vmatprep.mubr.f32.mxu0 0.0
      %2048 = vmatmul.mubr.f32.gmra.mrb[0].mxu0 %v1889
      %v2049 = vpop.f32.mrb[0].mxu0
      %v2050 = vadd.f32 0.0, %v2049
      %v2051 = vpop.f32.mrb[0].mxu0
      %2052 = vmatprep.mubr.f32.mxu0 0.0
      %2053 = vmatmul.mubr.f32.gmra.mrb[0].mxu0 %v1892
      %v2054 = vpop.f32.mrb[0].mxu0
      %v2055 = vadd.f32 0.0, %v2054
      %v2056 = vpop.f32.mrb[0].mxu0
      %2057 = vmatprep.mubr.f32.mxu0 0.0
      %2058 = vmatmul.mubr.f32.gmra.mrb[0].mxu0 %v1895
      %v2059 = vpop.f32.mrb[0].mxu0
      %v2060 = vpop.f32.mrb[0].mxu0
      %2061 = vmatprep.mubr.f32.mxu0 0.0
      %2062 = vmatmul.mubr.f32.gmra.mrb[0].mxu0 %v1898
      %v2063 = vpop.f32.mrb[0].mxu0
      %v2064 = vadd.f32 0.0, %v2063
      %v2065 = vpop.f32.mrb[0].mxu0
      %2066 = vmatprep.mubr.f32.mxu0 0.0
      %2067 = vmatmul.mubr.f32.gmra.mrb[0].mxu0 %v1901
      %v2068 = vpop.f32.mrb[0].mxu0
      %v2069 = vadd.f32 0.0, %v2068
      %v2070 = vpop.f32.mrb[0].mxu0
      %2071 = vmatprep.mubr.f32.mxu0 0.0
      %2072 = vmatmul.mubr.f32.gmra.mrb[0].mxu0 %v1904
      %v2073 = vpop.f32.mrb[0].mxu0
      %v2074 = vpop.f32.mrb[0].mxu0
      %2075 = vmatprep.mubr.f32.mxu0 0.0
      %2076 = vmatmul.mubr.f32.gmra.mrb[0].mxu0 %v1907
      %v2077 = vpop.f32.mrb[0].mxu0
      %v2078 = vadd.f32 0.0, %v2077
      %v2079 = vpop.f32.mrb[0].mxu0
      %2080 = vmatprep.mubr.f32.mxu0 0.0
      %2081 = vmatmul.mubr.f32.gmra.mrb[0].mxu0 %v1910
      %v2082 = vpop.f32.mrb[0].mxu0
      %v2083 = vadd.f32 0.0, %v2082
      %v2084 = vpop.f32.mrb[0].mxu0
      %2085 = vmatprep.mubr.f32.mxu0 0.0
      %2086 = vmatmul.mubr.f32.gmra.mrb[0].mxu0 %v1913
      %v2087 = vpop.f32.mrb[0].mxu0
      %v2088 = vpop.f32.mrb[0].mxu0
      %2089 = vmatprep.mubr.f32.mxu0 0.0
      %2090 = vmatmul.mubr.f32.gmra.mrb[0].mxu0 %v1916
      %v2091 = vpop.f32.mrb[0].mxu0
      %v2092 = vadd.f32 0.0, %v2091
      %v2093 = vpop.f32.mrb[0].mxu0
      %2094 = vmatprep.mubr.f32.mxu0 0.0
      %2095 = vmatmul.mubr.f32.gmra.mrb[0].mxu0 %v1919
      %v2096 = vpop.f32.mrb[0].mxu0
      %v2097 = vadd.f32 0.0, %v2096
      %v2098 = vpop.f32.mrb[0].mxu0
      %2099 = vmatprep.mubr.f32.mxu0 0.0
      %2100 = vmatmul.mubr.f32.gmra.mrb[0].mxu0 %v1922
      %v2101 = vpop.f32.mrb[0].mxu0
      %v2102 = vpop.f32.mrb[0].mxu0
      %2103 = vdwg.mxu0
      %v2105 = vsel %vm413, %v1822, 0
      %v2108 = vsel %vm413, %v1823, 0
      %v2111 = vsel %vm413, %v1824, 0
      %v2114 = vsel %vm633, %v1846, 0
      %2116 = vmatprep.subr.mxu0 0.0
      %2117 = vmatpush1.msra.mxu0 %v2114
      %2118 = vmatprep.subr.mxu0 0.0
      %2119 = vmatpush1.msra.mxu0 0.0
      %2120 = vmatprep.subr.mxu0 0.0
      %2121 = vmatpush1.msra.mxu0 0.0
      %2122 = vmatprep.subr.mxu0 0.0
      %2123 = vmatpush1.msra.mxu0 0.0
      %2124 = vmatprep.subr.mxu0 0.0
      %2125 = vmatpush1.msra.mxu0 0.0
      %2126 = vmatprep.subr.mxu0 0.0
      %2127 = vmatpush1.msra.mxu0 0.0
      %2128 = vmatprep.subr.mxu0 0.0
      %2129 = vmatpush1.msra.mxu0 0.0
      %2130 = vmatprep.subr.mxu0 0.0
      %2131 = vmatpush1.msra.mxu0 0.0
      %2132 = vmatprep.subr.mxu0 0.0
      %2133 = vmatpush1.msra.mxu0 0.0
      %2134 = vmatprep.subr.mxu0 0.0
      %2135 = vmatpush1.msra.mxu0 0.0
      %2136 = vmatprep.subr.mxu0 0.0
      %2137 = vmatpush1.msra.mxu0 0.0
      %2138 = vmatprep.subr.mxu0 0.0
      %2139 = vmatpush1.msra.mxu0 0.0
      %2140 = vmatprep.subr.mxu0 0.0
      %2141 = vmatpush1.msra.mxu0 0.0
      %2142 = vmatprep.subr.mxu0 0.0
      %2143 = vmatpush1.msra.mxu0 0.0
      %2144 = vmatprep.subr.mxu0 0.0
      %2145 = vmatpush1.msra.mxu0 0.0
      %2146 = vmatprep.subr.mxu0 0.0
      %2147 = vmatpush1.msra.mxu0 0.0
      %2148 = vmatprep.subr.mxu0 0.0
      %2149 = vmatpush1.msra.mxu0 0.0
      %2150 = vmatprep.subr.mxu0 0.0
      %2151 = vmatpush1.msra.mxu0 0.0
      %2152 = vmatprep.subr.mxu0 0.0
      %2153 = vmatpush1.msra.mxu0 0.0
      %2154 = vmatprep.subr.mxu0 0.0
      %2155 = vmatpush1.msra.mxu0 0.0
      %2156 = vmatprep.subr.mxu0 0.0
      %2157 = vmatpush1.msra.mxu0 0.0
      %2158 = vmatprep.subr.mxu0 0.0
      %2159 = vmatpush1.msra.mxu0 0.0
      %2160 = vmatprep.subr.mxu0 0.0
      %2161 = vmatpush1.msra.mxu0 0.0
      %2162 = vmatprep.subr.mxu0 0.0
      %2163 = vmatpush1.msra.mxu0 0.0
      %2164 = vmatprep.subr.mxu0 0.0
      %2165 = vmatpush1.msra.mxu0 0.0
      %2166 = vmatprep.subr.mxu0 0.0
      %2167 = vmatpush1.msra.mxu0 0.0
      %2168 = vmatprep.subr.mxu0 0.0
      %2169 = vmatpush1.msra.mxu0 0.0
      %2170 = vmatprep.subr.mxu0 0.0
      %2171 = vmatpush1.msra.mxu0 0.0
      %2172 = vmatprep.subr.mxu0 0.0
      %2173 = vmatpush1.msra.mxu0 0.0
      %2174 = vmatprep.subr.mxu0 0.0
      %2175 = vmatpush1.msra.mxu0 0.0
      %2176 = vmatprep.subr.mxu0 0.0
      %2177 = vmatpush1.msra.mxu0 0.0
      %2178 = vmatprep.subr.mxu0 0.0
      %2179 = vmatpush1.msra.mxu0 0.0
      %2180 = vmatprep.mubr.f32.mxu0 0.0
      %2181 = vmatmul.mubr.f32.gmra.mrb[0].mxu0 %v2105
      %v2182 = vpop.f32.mrb[0].mxu0
      %v2183 = vadd.f32 %v1994, %v2182
      %v2184 = vpop.f32.mrb[0].mxu0
      %2185 = vmatprep.mubr.f32.mxu0 0.0
      %2186 = vmatmul.mubr.f32.gmra.mrb[0].mxu0 %v2108
      %v2187 = vpop.f32.mrb[0].mxu0
      %v2188 = vadd.f32 %v1999, %v2187
      %v2189 = vpop.f32.mrb[0].mxu0
      %2190 = vmatprep.mubr.f32.mxu0 0.0
      %2191 = vmatmul.mubr.f32.gmra.mrb[0].mxu0 %v2111
      %v2192 = vpop.f32.mrb[0].mxu0
      %v2193 = vpop.f32.mrb[0].mxu0
      %2194 = vmatprep.mubr.f32.mxu0 0.0
      %2195 = vmatmul.mubr.f32.gmra.mrb[0].mxu0 %v1853
      %v2196 = vpop.f32.mrb[0].mxu0
      %v2197 = vadd.f32 %v2008, %v2196
      %v2198 = vpop.f32.mrb[0].mxu0
      %2199 = vmatprep.mubr.f32.mxu0 0.0
      %2200 = vmatmul.mubr.f32.gmra.mrb[0].mxu0 %v1856
      %v2201 = vpop.f32.mrb[0].mxu0
      %v2202 = vadd.f32 %v2013, %v2201
      %v2203 = vpop.f32.mrb[0].mxu0
      %2204 = vmatprep.mubr.f32.mxu0 0.0
      %2205 = vmatmul.mubr.f32.gmra.mrb[0].mxu0 %v1859
      %v2206 = vpop.f32.mrb[0].mxu0
      %v2207 = vpop.f32.mrb[0].mxu0
      %2208 = vmatprep.mubr.f32.mxu0 0.0
      %2209 = vmatmul.mubr.f32.gmra.mrb[0].mxu0 %v1862
      %v2210 = vpop.f32.mrb[0].mxu0
      %v2211 = vadd.f32 %v2022, %v2210
      %v2212 = vpop.f32.mrb[0].mxu0
      %2213 = vmatprep.mubr.f32.mxu0 0.0
      %2214 = vmatmul.mubr.f32.gmra.mrb[0].mxu0 %v1865
      %v2215 = vpop.f32.mrb[0].mxu0
      %v2216 = vadd.f32 %v2027, %v2215
      %v2217 = vpop.f32.mrb[0].mxu0
      %2218 = vmatprep.mubr.f32.mxu0 0.0
      %2219 = vmatmul.mubr.f32.gmra.mrb[0].mxu0 %v1868
      %v2220 = vpop.f32.mrb[0].mxu0
      %v2221 = vpop.f32.mrb[0].mxu0
      %2222 = vmatprep.mubr.f32.mxu0 0.0
      %2223 = vmatmul.mubr.f32.gmra.mrb[0].mxu0 %v1871
      %v2224 = vpop.f32.mrb[0].mxu0
      %v2225 = vadd.f32 %v2036, %v2224
      %v2226 = vpop.f32.mrb[0].mxu0
      %2227 = vmatprep.mubr.f32.mxu0 0.0
      %2228 = vmatmul.mubr.f32.gmra.mrb[0].mxu0 %v1874
      %v2229 = vpop.f32.mrb[0].mxu0
      %v2230 = vadd.f32 %v2041, %v2229
      %v2231 = vpop.f32.mrb[0].mxu0
      %2232 = vmatprep.mubr.f32.mxu0 0.0
      %2233 = vmatmul.mubr.f32.gmra.mrb[0].mxu0 %v1877
      %v2234 = vpop.f32.mrb[0].mxu0
      %v2235 = vpop.f32.mrb[0].mxu0
      %2236 = vmatprep.mubr.f32.mxu0 0.0
      %2237 = vmatmul.mubr.f32.gmra.mrb[0].mxu0 %v1880
      %v2238 = vpop.f32.mrb[0].mxu0
      %v2239 = vadd.f32 %v2050, %v2238
      %v2240 = vpop.f32.mrb[0].mxu0
      %2241 = vmatprep.mubr.f32.mxu0 0.0
      %2242 = vmatmul.mubr.f32.gmra.mrb[0].mxu0 %v1883
      %v2243 = vpop.f32.mrb[0].mxu0
      %v2244 = vadd.f32 %v2055, %v2243
      %v2245 = vpop.f32.mrb[0].mxu0
      %2246 = vmatprep.mubr.f32.mxu0 0.0
      %2247 = vmatmul.mubr.f32.gmra.mrb[0].mxu0 %v1886
      %v2248 = vpop.f32.mrb[0].mxu0
      %v2249 = vpop.f32.mrb[0].mxu0
      %2250 = vmatprep.mubr.f32.mxu0 0.0
      %2251 = vmatmul.mubr.f32.gmra.mrb[0].mxu0 %v1889
      %v2252 = vpop.f32.mrb[0].mxu0
      %v2253 = vadd.f32 %v2064, %v2252
      %v2254 = vpop.f32.mrb[0].mxu0
      %2255 = vmatprep.mubr.f32.mxu0 0.0
      %2256 = vmatmul.mubr.f32.gmra.mrb[0].mxu0 %v1892
      %v2257 = vpop.f32.mrb[0].mxu0
      %v2258 = vadd.f32 %v2069, %v2257
      %v2259 = vpop.f32.mrb[0].mxu0
      %2260 = vmatprep.mubr.f32.mxu0 0.0
      %2261 = vmatmul.mubr.f32.gmra.mrb[0].mxu0 %v1895
      %v2262 = vpop.f32.mrb[0].mxu0
      %v2263 = vpop.f32.mrb[0].mxu0
      %2264 = vmatprep.mubr.f32.mxu0 0.0
      %2265 = vmatmul.mubr.f32.gmra.mrb[0].mxu0 %v1898
      %v2266 = vpop.f32.mrb[0].mxu0
      %v2267 = vadd.f32 %v2078, %v2266
      %v2268 = vpop.f32.mrb[0].mxu0
      %2269 = vmatprep.mubr.f32.mxu0 0.0
      %2270 = vmatmul.mubr.f32.gmra.mrb[0].mxu0 %v1901
      %v2271 = vpop.f32.mrb[0].mxu0
      %v2272 = vadd.f32 %v2083, %v2271
      %v2273 = vpop.f32.mrb[0].mxu0
      %2274 = vmatprep.mubr.f32.mxu0 0.0
      %2275 = vmatmul.mubr.f32.gmra.mrb[0].mxu0 %v1904
      %v2276 = vpop.f32.mrb[0].mxu0
      %v2277 = vpop.f32.mrb[0].mxu0
      %2278 = vmatprep.mubr.f32.mxu0 0.0
      %2279 = vmatmul.mubr.f32.gmra.mrb[0].mxu0 %v1907
      %v2280 = vpop.f32.mrb[0].mxu0
      %v2281 = vadd.f32 %v2092, %v2280
      %v2282 = vpop.f32.mrb[0].mxu0
      %2283 = vmatprep.mubr.f32.mxu0 0.0
      %2284 = vmatmul.mubr.f32.gmra.mrb[0].mxu0 %v1910
      %v2285 = vpop.f32.mrb[0].mxu0
      %v2286 = vadd.f32 %v2097, %v2285
      %v2287 = vpop.f32.mrb[0].mxu0
      %2288 = vmatprep.mubr.f32.mxu0 0.0
      %2289 = vmatmul.mubr.f32.gmra.mrb[0].mxu0 %v1913
      %v2290 = vpop.f32.mrb[0].mxu0
      %v2291 = vpop.f32.mrb[0].mxu0
      %2292 = vdwg.mxu0
      %v2293 = vld [vmem:[#allocation3 + $0x30] sm:$0xff]
      %v2294 = vld [vmem:[#allocation3 + $0x38] sm:$0xff]
      %v2295 = vld [vmem:[#allocation3 + $0x40] sm:$0xff]
      %v2296 = vld [vmem:[#allocation3 + $0x48] sm:$0xff]
      %v2297 = vld [vmem:[#allocation3 + $0x50] sm:$0xff]
      %v2298 = vld [vmem:[#allocation3 + $0x58] sm:$0xff]
      %v2299 = vld [vmem:[#allocation3 + $0x60] sm:$0xff]
      %v2300 = vld [vmem:[#allocation3 + $0x68] sm:$0xff]
      %v2301 = vld [vmem:[#allocation3 + $0x70] sm:$0xff]
      %v2302 = vld [vmem:[#allocation3 + $0x78] sm:$0xff]
      %v2303 = vld [vmem:[#allocation3 + $0x80] sm:$0xff]
      %v2304 = vld [vmem:[#allocation3 + $0x88] sm:$0xff]
      %v2305 = vld [vmem:[#allocation3 + $0x90] sm:$0xff]
      %v2306 = vld [vmem:[#allocation3 + $0x98] sm:$0xff]
      %v2307 = vld [vmem:[#allocation3 + $0xa0] sm:$0xff]
      %v2308 = vld [vmem:[#allocation3 + $0xa8] sm:$0xff]
      %v2309 = vld [vmem:[#allocation3 + $0xb0] sm:$0xff]
      %v2310 = vld [vmem:[#allocation3 + $0xb8] sm:$0xff]
      %v2311 = vld [vmem:[#allocation3 + $0xc0] sm:$0xff]
      %v2312 = vld [vmem:[#allocation3 + $0xc8] sm:$0xff]
      %v2313 = vld [vmem:[#allocation3 + $0xd0] sm:$0xff]
      %v2314 = vld [vmem:[#allocation3 + $0xd8] sm:$0xff]
      %v2315 = vld [vmem:[#allocation3 + $0xe0] sm:$0xff]
      %v2316 = vld [vmem:[#allocation3 + $0xe8] sm:$0xff]
      %s2317 = scalar_lea.vmem %s5, 8
      %v2318 = vld [vmem:[%s2317] sm:$0xf]
      %v2320 = vsel %vm413, %v2293, 0
      %v2323 = vsel %vm413, %v2294, 0
      %v2326 = vsel %vm413, %v2295, 0
      %v2329 = vsel %vm413, %v2296, 0
      %v2332 = vsel %vm413, %v2297, 0
      %v2335 = vsel %vm413, %v2298, 0
      %v2338 = vsel %vm413, %v2299, 0
      %v2341 = vsel %vm413, %v2300, 0
      %v2344 = vsel %vm413, %v2301, 0
      %v2347 = vsel %vm413, %v2302, 0
      %v2350 = vsel %vm413, %v2303, 0
      %v2353 = vsel %vm413, %v2304, 0
      %v2356 = vsel %vm413, %v2305, 0
      %v2359 = vsel %vm413, %v2306, 0
      %v2362 = vsel %vm413, %v2307, 0
      %v2365 = vsel %vm413, %v2308, 0
      %v2368 = vsel %vm413, %v2309, 0
      %v2371 = vsel %vm413, %v2310, 0
      %v2374 = vsel %vm413, %v2311, 0
      %v2377 = vsel %vm413, %v2312, 0
      %v2380 = vsel %vm413, %v2313, 0
      %v2383 = vsel %vm413, %v2314, 0
      %v2386 = vsel %vm413, %v2315, 0
      %v2389 = vsel %vm413, %v2316, 0
      %v2392 = vsel %vm633, %v2318, 0
      %2394 = vmatprep.subr.mxu0 0.0
      %2395 = vmatpush1.msra.mxu0 %v2392
      %2396 = vmatprep.subr.mxu0 0.0
      %2397 = vmatpush1.msra.mxu0 0.0
      %2398 = vmatprep.subr.mxu0 0.0
      %2399 = vmatpush1.msra.mxu0 0.0
      %2400 = vmatprep.subr.mxu0 0.0
      %2401 = vmatpush1.msra.mxu0 0.0
      %2402 = vmatprep.subr.mxu0 0.0
      %2403 = vmatpush1.msra.mxu0 0.0
      %2404 = vmatprep.subr.mxu0 0.0
      %2405 = vmatpush1.msra.mxu0 0.0
      %2406 = vmatprep.subr.mxu0 0.0
      %2407 = vmatpush1.msra.mxu0 0.0
      %2408 = vmatprep.subr.mxu0 0.0
      %2409 = vmatpush1.msra.mxu0 0.0
      %2410 = vmatprep.subr.mxu0 0.0
      %2411 = vmatpush1.msra.mxu0 0.0
      %2412 = vmatprep.subr.mxu0 0.0
      %2413 = vmatpush1.msra.mxu0 0.0
      %2414 = vmatprep.subr.mxu0 0.0
      %2415 = vmatpush1.msra.mxu0 0.0
      %2416 = vmatprep.subr.mxu0 0.0
      %2417 = vmatpush1.msra.mxu0 0.0
      %2418 = vmatprep.subr.mxu0 0.0
      %2419 = vmatpush1.msra.mxu0 0.0
      %2420 = vmatprep.subr.mxu0 0.0
      %2421 = vmatpush1.msra.mxu0 0.0
      %2422 = vmatprep.subr.mxu0 0.0
      %2423 = vmatpush1.msra.mxu0 0.0
      %2424 = vmatprep.subr.mxu0 0.0
      %2425 = vmatpush1.msra.mxu0 0.0
      %2426 = vmatprep.subr.mxu0 0.0
      %2427 = vmatpush1.msra.mxu0 0.0
      %2428 = vmatprep.subr.mxu0 0.0
      %2429 = vmatpush1.msra.mxu0 0.0
      %2430 = vmatprep.subr.mxu0 0.0
      %2431 = vmatpush1.msra.mxu0 0.0
      %2432 = vmatprep.subr.mxu0 0.0
      %2433 = vmatpush1.msra.mxu0 0.0
      %2434 = vmatprep.subr.mxu0 0.0
      %2435 = vmatpush1.msra.mxu0 0.0
      %2436 = vmatprep.subr.mxu0 0.0
      %2437 = vmatpush1.msra.mxu0 0.0
      %2438 = vmatprep.subr.mxu0 0.0
      %2439 = vmatpush1.msra.mxu0 0.0
      %2440 = vmatprep.subr.mxu0 0.0
      %2441 = vmatpush1.msra.mxu0 0.0
      %2442 = vmatprep.subr.mxu0 0.0
      %2443 = vmatpush1.msra.mxu0 0.0
      %2444 = vmatprep.subr.mxu0 0.0
      %2445 = vmatpush1.msra.mxu0 0.0
      %2446 = vmatprep.subr.mxu0 0.0
      %2447 = vmatpush1.msra.mxu0 0.0
      %2448 = vmatprep.subr.mxu0 0.0
      %2449 = vmatpush1.msra.mxu0 0.0
      %2450 = vmatprep.subr.mxu0 0.0
      %2451 = vmatpush1.msra.mxu0 0.0
      %2452 = vmatprep.subr.mxu0 0.0
      %2453 = vmatpush1.msra.mxu0 0.0
      %2454 = vmatprep.subr.mxu0 0.0
      %2455 = vmatpush1.msra.mxu0 0.0
      %2456 = vmatprep.subr.mxu0 0.0
      %2457 = vmatpush1.msra.mxu0 0.0
      %2458 = vmatprep.mubr.f32.mxu0 0.0
      %2459 = vmatmul.mubr.f32.gmra.mrb[0].mxu0 %v2320
      %v2460 = vpop.f32.mrb[0].mxu0
      %v2461 = vadd.f32 0.0, %v2460
      %v2462 = vpop.f32.mrb[0].mxu0
      %2463 = vmatprep.mubr.f32.mxu0 0.0
      %2464 = vmatmul.mubr.f32.gmra.mrb[0].mxu0 %v2323
      %v2465 = vpop.f32.mrb[0].mxu0
      %v2466 = vadd.f32 0.0, %v2465
      %v2467 = vpop.f32.mrb[0].mxu0
      %2468 = vmatprep.mubr.f32.mxu0 0.0
      %2469 = vmatmul.mubr.f32.gmra.mrb[0].mxu0 %v2326
      %v2470 = vpop.f32.mrb[0].mxu0
      %v2471 = vpop.f32.mrb[0].mxu0
      %2472 = vmatprep.mubr.f32.mxu0 0.0
      %2473 = vmatmul.mubr.f32.gmra.mrb[0].mxu0 %v2329
      %v2474 = vpop.f32.mrb[0].mxu0
      %v2475 = vadd.f32 0.0, %v2474
      %v2476 = vpop.f32.mrb[0].mxu0
      %2477 = vmatprep.mubr.f32.mxu0 0.0
      %2478 = vmatmul.mubr.f32.gmra.mrb[0].mxu0 %v2332
      %v2479 = vpop.f32.mrb[0].mxu0
      %v2480 = vadd.f32 0.0, %v2479
      %v2481 = vpop.f32.mrb[0].mxu0
      %2482 = vmatprep.mubr.f32.mxu0 0.0
      %2483 = vmatmul.mubr.f32.gmra.mrb[0].mxu0 %v2335
      %v2484 = vpop.f32.mrb[0].mxu0
      %v2485 = vpop.f32.mrb[0].mxu0
      %2486 = vmatprep.mubr.f32.mxu0 0.0
      %2487 = vmatmul.mubr.f32.gmra.mrb[0].mxu0 %v2338
      %v2488 = vpop.f32.mrb[0].mxu0
      %v2489 = vadd.f32 0.0, %v2488
      %v2490 = vpop.f32.mrb[0].mxu0
      %2491 = vmatprep.mubr.f32.mxu0 0.0
      %2492 = vmatmul.mubr.f32.gmra.mrb[0].mxu0 %v2341
      %v2493 = vpop.f32.mrb[0].mxu0
      %v2494 = vadd.f32 0.0, %v2493
      %v2495 = vpop.f32.mrb[0].mxu0
      %2496 = vmatprep.mubr.f32.mxu0 0.0
      %2497 = vmatmul.mubr.f32.gmra.mrb[0].mxu0 %v2344
      %v2498 = vpop.f32.mrb[0].mxu0
      %v2499 = vpop.f32.mrb[0].mxu0
      %2500 = vmatprep.mubr.f32.mxu0 0.0
      %2501 = vmatmul.mubr.f32.gmra.mrb[0].mxu0 %v2347
      %v2502 = vpop.f32.mrb[0].mxu0
      %v2503 = vadd.f32 0.0, %v2502
      %v2504 = vpop.f32.mrb[0].mxu0
      %2505 = vmatprep.mubr.f32.mxu0 0.0
      %2506 = vmatmul.mubr.f32.gmra.mrb[0].mxu0 %v2350
      %v2507 = vpop.f32.mrb[0].mxu0
      %v2508 = vadd.f32 0.0, %v2507
      %v2509 = vpop.f32.mrb[0].mxu0
      %2510 = vmatprep.mubr.f32.mxu0 0.0
      %2511 = vmatmul.mubr.f32.gmra.mrb[0].mxu0 %v2353
      %v2512 = vpop.f32.mrb[0].mxu0
      %v2513 = vpop.f32.mrb[0].mxu0
      %2514 = vmatprep.mubr.f32.mxu0 0.0
      %2515 = vmatmul.mubr.f32.gmra.mrb[0].mxu0 %v2356
      %v2516 = vpop.f32.mrb[0].mxu0
      %v2517 = vadd.f32 0.0, %v2516
      %v2518 = vpop.f32.mrb[0].mxu0
      %2519 = vmatprep.mubr.f32.mxu0 0.0
      %2520 = vmatmul.mubr.f32.gmra.mrb[0].mxu0 %v2359
      %v2521 = vpop.f32.mrb[0].mxu0
      %v2522 = vadd.f32 0.0, %v2521
      %v2523 = vpop.f32.mrb[0].mxu0
      %2524 = vmatprep.mubr.f32.mxu0 0.0
      %2525 = vmatmul.mubr.f32.gmra.mrb[0].mxu0 %v2362
      %v2526 = vpop.f32.mrb[0].mxu0
      %v2527 = vpop.f32.mrb[0].mxu0
      %2528 = vmatprep.mubr.f32.mxu0 0.0
      %2529 = vmatmul.mubr.f32.gmra.mrb[0].mxu0 %v2365
      %v2530 = vpop.f32.mrb[0].mxu0
      %v2531 = vadd.f32 0.0, %v2530
      %v2532 = vpop.f32.mrb[0].mxu0
      %2533 = vmatprep.mubr.f32.mxu0 0.0
      %2534 = vmatmul.mubr.f32.gmra.mrb[0].mxu0 %v2368
      %v2535 = vpop.f32.mrb[0].mxu0
      %v2536 = vadd.f32 0.0, %v2535
      %v2537 = vpop.f32.mrb[0].mxu0
      %2538 = vmatprep.mubr.f32.mxu0 0.0
      %2539 = vmatmul.mubr.f32.gmra.mrb[0].mxu0 %v2371
      %v2540 = vpop.f32.mrb[0].mxu0
      %v2541 = vpop.f32.mrb[0].mxu0
      %2542 = vmatprep.mubr.f32.mxu0 0.0
      %2543 = vmatmul.mubr.f32.gmra.mrb[0].mxu0 %v2374
      %v2544 = vpop.f32.mrb[0].mxu0
      %v2545 = vadd.f32 0.0, %v2544
      %v2546 = vpop.f32.mrb[0].mxu0
      %2547 = vmatprep.mubr.f32.mxu0 0.0
      %2548 = vmatmul.mubr.f32.gmra.mrb[0].mxu0 %v2377
      %v2549 = vpop.f32.mrb[0].mxu0
      %v2550 = vadd.f32 0.0, %v2549
      %v2551 = vpop.f32.mrb[0].mxu0
      %2552 = vmatprep.mubr.f32.mxu0 0.0
      %2553 = vmatmul.mubr.f32.gmra.mrb[0].mxu0 %v2380
      %v2554 = vpop.f32.mrb[0].mxu0
      %v2555 = vpop.f32.mrb[0].mxu0
      %2556 = vmatprep.mubr.f32.mxu0 0.0
      %2557 = vmatmul.mubr.f32.gmra.mrb[0].mxu0 %v2383
      %v2558 = vpop.f32.mrb[0].mxu0
      %v2559 = vadd.f32 0.0, %v2558
      %v2560 = vpop.f32.mrb[0].mxu0
      %2561 = vmatprep.mubr.f32.mxu0 0.0
      %2562 = vmatmul.mubr.f32.gmra.mrb[0].mxu0 %v2386
      %v2563 = vpop.f32.mrb[0].mxu0
      %v2564 = vadd.f32 0.0, %v2563
      %v2565 = vpop.f32.mrb[0].mxu0
      %2566 = vmatprep.mubr.f32.mxu0 0.0
      %2567 = vmatmul.mubr.f32.gmra.mrb[0].mxu0 %v2389
      %v2568 = vpop.f32.mrb[0].mxu0
      %v2569 = vpop.f32.mrb[0].mxu0
      %2570 = vdwg.mxu0
      %v2571 = vadd.f32 %v2183, %v2461
      %v2572 = vadd.f32 %v2188, %v2466
      %v2573 = vadd.f32 %v2197, %v2475
      %v2574 = vadd.f32 %v2202, %v2480
      %v2575 = vadd.f32 %v2211, %v2489
      %v2576 = vadd.f32 %v2216, %v2494
      %v2577 = vadd.f32 %v2225, %v2503
      %v2578 = vadd.f32 %v2230, %v2508
      %v2579 = vadd.f32 %v2239, %v2517
      %v2580 = vadd.f32 %v2244, %v2522
      %v2581 = vadd.f32 %v2253, %v2531
      %v2582 = vadd.f32 %v2258, %v2536
      %v2583 = vadd.f32 %v2267, %v2545
      %v2584 = vadd.f32 %v2272, %v2550
      %v2585 = vadd.f32 %v2281, %v2559
      %v2586 = vadd.f32 %v2286, %v2564
      %v2587 = vld [vmem:[%s6] sm:$0x1]
      %v2589 = vlaneseq
      %v2590 = vshrl.u32 %v2589, 7
      %v2591 = vsub.s32 0, %v2590
      %v2592 = vrot.slane %v2587, %v2591
      %v2594 = vadd.f32 %v2571, %v2592
      %v2595 = vadd.f32 %v2572, %v2592
      %v2596 = vadd.f32 %v2573, %v2592
      %v2597 = vadd.f32 %v2574, %v2592
      %v2598 = vadd.f32 %v2575, %v2592
      %v2599 = vadd.f32 %v2576, %v2592
      %v2600 = vadd.f32 %v2577, %v2592
      %v2601 = vadd.f32 %v2578, %v2592
      %v2602 = vadd.f32 %v2579, %v2592
      %v2603 = vadd.f32 %v2580, %v2592
      %v2604 = vadd.f32 %v2581, %v2592
      %v2605 = vadd.f32 %v2582, %v2592
      %v2606 = vadd.f32 %v2583, %v2592
      %v2607 = vadd.f32 %v2584, %v2592
      %v2608 = vadd.f32 %v2585, %v2592
      %v2609 = vadd.f32 %v2586, %v2592
      %v2610 = vsub.f32 0.0, %v2594
      %v2611 = vsub.f32 0.0, %v2595
      %v2612 = vsub.f32 0.0, %v2596
      %v2613 = vsub.f32 0.0, %v2597
      %v2614 = vsub.f32 0.0, %v2598
      %v2615 = vsub.f32 0.0, %v2599
      %v2616 = vsub.f32 0.0, %v2600
      %v2617 = vsub.f32 0.0, %v2601
      %v2618 = vsub.f32 0.0, %v2602
      %v2619 = vsub.f32 0.0, %v2603
      %v2620 = vsub.f32 0.0, %v2604
      %v2621 = vsub.f32 0.0, %v2605
      %v2622 = vsub.f32 0.0, %v2606
      %v2623 = vsub.f32 0.0, %v2607
      %v2624 = vsub.f32 0.0, %v2608
      %v2625 = vsub.f32 0.0, %v2609
      %v2626 = vmul.f32 %v2610, 1.442695
      %v2627 = vpow.pop %v2626
      %v2628 = vmul.f32 %v2611, 1.442695
      %v2629 = vpow.pop %v2628
      %v2630 = vmul.f32 %v2612, 1.442695
      %v2631 = vpow.pop %v2630
      %v2632 = vmul.f32 %v2613, 1.442695
      %v2633 = vpow.pop %v2632
      %v2634 = vmul.f32 %v2614, 1.442695
      %v2635 = vpow.pop %v2634
      %v2636 = vmul.f32 %v2615, 1.442695
      %v2637 = vpow.pop %v2636
      %v2638 = vmul.f32 %v2616, 1.442695
      %v2639 = vpow.pop %v2638
      %v2640 = vmul.f32 %v2617, 1.442695
      %v2641 = vpow.pop %v2640
      %v2642 = vmul.f32 %v2618, 1.442695
      %v2643 = vpow.pop %v2642
      %v2644 = vmul.f32 %v2619, 1.442695
      %v2645 = vpow.pop %v2644
      %v2646 = vmul.f32 %v2620, 1.442695
      %v2647 = vpow.pop %v2646
      %v2648 = vmul.f32 %v2621, 1.442695
      %v2649 = vpow.pop %v2648
      %v2650 = vmul.f32 %v2622, 1.442695
      %v2651 = vpow.pop %v2650
      %v2652 = vmul.f32 %v2623, 1.442695
      %v2653 = vpow.pop %v2652
      %v2654 = vmul.f32 %v2624, 1.442695
      %v2655 = vpow.pop %v2654
      %v2656 = vmul.f32 %v2625, 1.442695
      %v2657 = vpow.pop %v2656
      %v2658 = vadd.f32 %v2627, 1.0
      %v2659 = vadd.f32 %v2629, 1.0
      %v2660 = vadd.f32 %v2631, 1.0
      %v2661 = vadd.f32 %v2633, 1.0
      %v2662 = vadd.f32 %v2635, 1.0
      %v2663 = vadd.f32 %v2637, 1.0
      %v2664 = vadd.f32 %v2639, 1.0
      %v2665 = vadd.f32 %v2641, 1.0
      %v2666 = vadd.f32 %v2643, 1.0
      %v2667 = vadd.f32 %v2645, 1.0
      %v2668 = vadd.f32 %v2647, 1.0
      %v2669 = vadd.f32 %v2649, 1.0
      %v2670 = vadd.f32 %v2651, 1.0
      %v2671 = vadd.f32 %v2653, 1.0
      %v2672 = vadd.f32 %v2655, 1.0
      %v2673 = vadd.f32 %v2657, 1.0
      %v2674 = vrcp.pop %v2658
      %v2675 = vrcp.pop %v2659
      %v2676 = vrcp.pop %v2660
      %v2677 = vrcp.pop %v2661
      %v2678 = vrcp.pop %v2662
      %v2679 = vrcp.pop %v2663
      %v2680 = vrcp.pop %v2664
      %v2681 = vrcp.pop %v2665
      %v2682 = vrcp.pop %v2666
      %v2683 = vrcp.pop %v2667
      %v2684 = vrcp.pop %v2668
      %v2685 = vrcp.pop %v2669
      %v2686 = vrcp.pop %v2670
      %v2687 = vrcp.pop %v2671
      %v2688 = vrcp.pop %v2672
      %v2689 = vrcp.pop %v2673
      %v2690 = vmul.f32 %v2594, %v2674
      %v2691 = vmul.f32 %v2595, %v2675
      %v2692 = vmul.f32 %v2596, %v2676
      %v2693 = vmul.f32 %v2597, %v2677
      %v2694 = vmul.f32 %v2598, %v2678
      %v2695 = vmul.f32 %v2599, %v2679
      %v2696 = vmul.f32 %v2600, %v2680
      %v2697 = vmul.f32 %v2601, %v2681
      %v2698 = vmul.f32 %v2602, %v2682
      %v2699 = vmul.f32 %v2603, %v2683
      %v2700 = vmul.f32 %v2604, %v2684
      %v2701 = vmul.f32 %v2605, %v2685
      %v2702 = vmul.f32 %v2606, %v2686
      %v2703 = vmul.f32 %v2607, %v2687
      %v2704 = vmul.f32 %v2608, %v2688
      %v2705 = vmul.f32 %v2609, %v2689
      %2706 = vst.msk [vmem:[%s384] sm:$0xff] %vm413, %v2690
      %2707 = vst.msk [vmem:[%s384 + $0x8] sm:$0xff] %vm413, %v2691
      %2708 = vst.msk [vmem:[%s384 + $0x10] sm:$0xff] %vm413, %v2692
      %2709 = vst.msk [vmem:[%s384 + $0x18] sm:$0xff] %vm413, %v2693
      %2710 = vst.msk [vmem:[%s384 + $0x20] sm:$0xff] %vm413, %v2694
      %2711 = vst.msk [vmem:[%s384 + $0x28] sm:$0xff] %vm413, %v2695
      %2712 = vst.msk [vmem:[%s384 + $0x30] sm:$0xff] %vm413, %v2696
      %2713 = vst.msk [vmem:[%s384 + $0x38] sm:$0xff] %vm413, %v2697
      %2714 = vst.msk [vmem:[%s384 + $0x40] sm:$0xff] %vm413, %v2698
      %2715 = vst.msk [vmem:[%s384 + $0x48] sm:$0xff] %vm413, %v2699
      %2716 = vst.msk [vmem:[%s384 + $0x50] sm:$0xff] %vm413, %v2700
      %2717 = vst.msk [vmem:[%s384 + $0x58] sm:$0xff] %vm413, %v2701
      %2718 = vst.msk [vmem:[%s384 + $0x60] sm:$0xff] %vm413, %v2702
      %2719 = vst.msk [vmem:[%s384 + $0x68] sm:$0xff] %vm413, %v2703
      %2720 = vst.msk [vmem:[%s384 + $0x70] sm:$0xff] %vm413, %v2704
      %2721 = vst.msk [vmem:[%s384 + $0x78] sm:$0xff] %vm413, %v2705
      %s2722 = smul.u32 8, %s23
      %p2723 = scmp.lt.s32.totalorder %s22, 1
      %s2724 = scalar_select %p2723, %s22, 1
      %p2725 = scmp.lt.s32.totalorder %s2722, 15
      %s2726 = scalar_select %p2725, %s2722, 15
      %s2727 = smul.addr %s2726, 2
      %s2728 = smul.addr %s2724, 32
      %s2729 = sadd.s32 %s2727, %s2728
      %s2730 = smul.addr %s2729, 8
      %s2731 = scalar_lea.vmem %s7, %s2730
      // Predicated region
      $region57: #{tpu_custom_call.1} parent=47 // pred_check
        %p2732 = pneg %p218
      $region58: #{tpu_custom_call.1} parent=47 // pred_check_branch
        %2734 = sbr.rel (%p2732) target = $region60
      $region59: #{tpu_custom_call.1} parent=47 // pred_region
        %s2735 = smul.u32 8, %s23
      $region60: #{tpu_custom_call.1} parent=47 // pred_fallthru
        _
    $region48: #{tpu_custom_call.1} parent=5 // pred_fallthru
      _
    %p2736 = scmp.le.s32.totalorder 2, %s13
    // Predicated region
    $region61: #{tpu_custom_call.1} parent=5 // pred_check
      %p2737 = pneg %p2736
    $region62: #{tpu_custom_call.1} parent=5 // pred_check_branch
      %2739 = sbr.rel (%p2737) target = $region64
    $region63: #{tpu_custom_call.1} parent=5 // pred_region
      %s2740 = ssub.s32 %s13, 2
      // Predicated region
      $region65: #{tpu_custom_call.1} parent=63 // pred_check
        %p2741 = pneg %p224
      $region66: #{tpu_custom_call.1} parent=63 // pred_check_branch
        %2743 = sbr.rel (%p2741) target = $region68
      $region67: #{tpu_custom_call.1} parent=63 // pred_region
        %s2744 = smul.u32 8, %s25
        %p2745 = scmp.lt.s32.totalorder %s24, 1
        %s2746 = scalar_select %p2745, %s24, 1
        %p2747 = scmp.lt.s32.totalorder %s2744, 15
        %s2748 = scalar_select %p2747, %s2744, 15
        %s2749 = smul.addr %s2748, 2
        %s2750 = smul.addr %s2746, 32
        %s2751 = sadd.s32 %s2749, %s2750
        %s2752 = smul.addr %s2751, 8
        %s2753 = scalar_lea.vmem %s7, %s2752
      $region68: #{tpu_custom_call.1} parent=63 // pred_fallthru
        _
    $region64: #{tpu_custom_call.1} parent=5 // pred_fallthru
      _
  $region6: #{tpu_custom_call.1} parent=0 // loop_footer
    %s17 = sadd.s32 1, %s13
  $region7: #{tpu_custom_call.1} parent=0 // loop_footer_branch
    %12 = sbr.rel target = $region3
  $region8: #{tpu_custom_call.1} parent=0 // loop_exit
    _

</llo_original>
